<compile_context>
chip_gen: v5e
topology: v5e:2x2
jax: 0.10.0
libtpu: 0.0.40
codegen_flags: <defaults>
</compile_context>

<pallas_src>
import functools
import math

import jax
import jax.numpy as jnp
from jax import lax
from jax.experimental import pallas as pl
from jax.experimental.pallas import tpu as pltpu


# ---------------------------------------------------------------------------
# Fused encoder-layer kernel: one grid step == one batch element.
# ---------------------------------------------------------------------------
def encoder_layer_kernel(x_ref, mask_ref,
                         wq_ref, bq_ref, wk_ref, bk_ref, wv_ref, bv_ref,
                         wo_ref, bo_ref, g1_ref, be1_ref,
                         w1_ref, b1_ref, w2_ref, b2_ref, g2_ref, be2_ref,
                         y_ref, attn_ref, *, num_heads):
    x = x_ref[0]          # (S, D)
    mask = mask_ref[0]    # (H, S, S) additive float mask
    S, D = x.shape
    H = num_heads
    Dh = D // H
    scale = 1.0 / math.sqrt(Dh)

    def dot(a, b):
        return jnp.dot(a, b, preferred_element_type=jnp.float32)

    # QKV projections (weights pre-transposed to (D, D) in the wrapper).
    q = dot(x, wq_ref[...]) + bq_ref[...]
    k = dot(x, wk_ref[...]) + bk_ref[...]
    v = dot(x, wv_ref[...]) + bv_ref[...]

    attn_sum = jnp.zeros((S, S), jnp.float32)
    proj_acc = jnp.zeros((S, D), jnp.float32)
    for h in range(H):                      # static, small loop over heads
        lo, hi = h * Dh, (h + 1) * Dh
        qh = q[:, lo:hi] * scale            # (S, Dh)
        kh = k[:, lo:hi]
        vh = v[:, lo:hi]
        scores = lax.dot_general(qh, kh, (((1,), (1,)), ((), ())),
                                 preferred_element_type=jnp.float32)  # (S, S)
        scores = scores + mask[h]
        m = jnp.max(scores, axis=-1, keepdims=True)
        e = jnp.exp(scores - m)
        p = e / jnp.sum(e, axis=-1, keepdims=True)
        attn_sum = attn_sum + p
        ctx_h = dot(p, vh)                  # (S, Dh)
        # Fold this head's slice of the output projection into the accumulator
        # (avoids a lane-axis concatenate of small per-head blocks).
        proj_acc = proj_acc + dot(ctx_h, wo_ref[lo:hi, :])

    attn_ref[0] = attn_sum * (1.0 / H)      # head-averaged attention weights
    attn_out = proj_acc + bo_ref[...]

    def layer_norm(z, g, b):
        mu = jnp.mean(z, axis=-1, keepdims=True)
        c = z - mu
        var = jnp.mean(c * c, axis=-1, keepdims=True)
        return c * lax.rsqrt(var + 1e-5) * g + b

    h1 = layer_norm(x + attn_out, g1_ref[...], be1_ref[...])
    f = jnp.maximum(dot(h1, w1_ref[...]) + b1_ref[...], 0.0)   # relu(linear1)
    f = dot(f, w2_ref[...]) + b2_ref[...]                      # linear2
    y_ref[0] = layer_norm(h1 + f, g2_ref[...], be2_ref[...])


def encoder_layer_forward(x, mask4, kparams, *, num_heads):
    """x: (B, S, D) f32; mask4: (B, H, S, S) additive f32 mask."""
    B, S, D = x.shape
    H = num_heads
    (wq_t, bq, wk_t, bk, wv_t, bv, wo_t, bo,
     g1, be1, w1_t, b1, w2_t, b2, g2, be2) = kparams
    Ff = w1_t.shape[1]

    def full(shape):
        zeros = (0,) * len(shape)
        return pl.BlockSpec(shape, lambda b, _z=zeros: _z)

    in_specs = [
        pl.BlockSpec((1, S, D), lambda b: (b, 0, 0)),        # x
        pl.BlockSpec((1, H, S, S), lambda b: (b, 0, 0, 0)),  # mask
        full((D, D)), full((1, D)),                          # Wq^T, bq
        full((D, D)), full((1, D)),                          # Wk^T, bk
        full((D, D)), full((1, D)),                          # Wv^T, bv
        full((D, D)), full((1, D)),                          # Wo^T, bo
        full((1, D)), full((1, D)),                          # norm1 gamma,beta
        full((D, Ff)), full((1, Ff)),                        # W1^T, b1
        full((Ff, D)), full((1, D)),                         # W2^T, b2
        full((1, D)), full((1, D)),                          # norm2 gamma,beta
    ]
    out_specs = [
        pl.BlockSpec((1, S, D), lambda b: (b, 0, 0)),
        pl.BlockSpec((1, S, S), lambda b: (b, 0, 0)),
    ]

    y, attn = pl.pallas_call(
        functools.partial(encoder_layer_kernel, num_heads=H),
        out_shape=(jax.ShapeDtypeStruct((B, S, D), jnp.float32),
                   jax.ShapeDtypeStruct((B, S, S), jnp.float32)),
        grid_spec=pltpu.PrefetchScalarGridSpec(
            num_scalar_prefetch=0,
            grid=(B,),
            in_specs=in_specs,
            out_specs=out_specs,
        ),
        compiler_params=pltpu.CompilerParams(
            dimension_semantics=("parallel",)),
    )(x, mask4, wq_t, bq, wk_t, bk, wv_t, bv, wo_t, bo,
      g1, be1, w1_t, b1, w2_t, b2, g2, be2)
    return y, attn


# ---------------------------------------------------------------------------
# Optional final LayerNorm (the `norm` argument of My_TransformerEncoder).
# Rows flattened to a lane-dense (B*S, D) slab, single grid step.
# ---------------------------------------------------------------------------
def layernorm_kernel(x_ref, g_ref, b_ref, o_ref):
    z = x_ref[...]
    mu = jnp.mean(z, axis=-1, keepdims=True)
    c = z - mu
    var = jnp.mean(c * c, axis=-1, keepdims=True)
    o_ref[...] = c * lax.rsqrt(var + 1e-5) * g_ref[...] + b_ref[...]


def final_layer_norm(x, gamma, beta):
    B, S, D = x.shape
    out = pl.pallas_call(
        layernorm_kernel,
        out_shape=jax.ShapeDtypeStruct((B * S, D), jnp.float32),
    )(x.reshape(B * S, D), gamma.reshape(1, D), beta.reshape(1, D))
    return out.reshape(B, S, D)


# ---------------------------------------------------------------------------
# Parameter handling / full-stack forward
# ---------------------------------------------------------------------------
def to_kernel_params(p):
    """PyTorch-layout params -> kernel layout (pre-transposed W, 2-D biases)."""
    (wq, bq, wk, bk, wv, bv, wo, bo,
     g1, be1, w1, b1, w2, b2, g2, be2) = p
    r = lambda v: v.reshape(1, -1)
    return (wq.T, r(bq), wk.T, r(bk), wv.T, r(bv), wo.T, r(bo),
            r(g1), r(be1), w1.T, r(b1), w2.T, r(b2), r(g2), r(be2))


def my_transformer_encoder(src, mask, layer_params, norm_params=None, *,
                           num_heads):
    """src: (B, S, D); mask: (B*num_heads, S, S) additive float mask or None."""
    B, S, D = src.shape
    if mask is None:
        mask4 = jnp.zeros((B, num_heads, S, S), jnp.float32)
    else:
        mask4 = mask.reshape(B, num_heads, S, S).astype(jnp.float32)
    # TODO(synk): src_key_padding_mask and train-mode dropout are not
    # implemented (eval-mode forward only).
    out = src
    attn = None
    for p in layer_params:
        out, attn = encoder_layer_forward(out, mask4, to_kernel_params(p),
                                          num_heads=num_heads)
    if norm_params is not None:
        out = final_layer_norm(out, norm_params[0], norm_params[1])
    return out, attn


def make_layer_params(key, d_model, dim_ff):
    ks = jax.random.split(key, 16)
    s = 1.0 / math.sqrt(d_model)
    sf = 1.0 / math.sqrt(dim_ff)
    n = lambda k, shp, sc: sc * jax.random.normal(k, shp, jnp.float32)
    wq = n(ks[0], (d_model, d_model), s);  bq = n(ks[1], (d_model,), 0.02)
    wk = n(ks[2], (d_model, d_model), s);  bk = n(ks[3], (d_model,), 0.02)
    wv = n(ks[4], (d_model, d_model), s);  bv = n(ks[5], (d_model,), 0.02)
    wo = n(ks[6], (d_model, d_model), s);  bo = n(ks[7], (d_model,), 0.02)
    w1 = n(ks[8], (dim_ff, d_model), s);   b1 = n(ks[9], (dim_ff,), 0.02)
    w2 = n(ks[10], (d_model, dim_ff), sf); b2 = n(ks[11], (d_model,), 0.02)
    g1 = 1.0 + n(ks[12], (d_model,), 0.1); be1 = n(ks[13], (d_model,), 0.1)
    g2 = 1.0 + n(ks[14], (d_model,), 0.1); be2 = n(ks[15], (d_model,), 0.1)
    return (wq, bq, wk, bk, wv, bv, wo, bo, g1, be1, w1, b1, w2, b2, g2, be2)


# ---------------------------------------------------------------------------
# Pure-JAX reference (same math as the PyTorch module, eval mode)
# ---------------------------------------------------------------------------
def reference(src, mask, layer_params, norm_params, *, num_heads):
    B, S, D = src.shape
    H = num_heads
    Dh = D // H

    def linear(v, w, b):
        return v @ w.T + b

    def ln(z, g, b):
        mu = z.mean(-1, keepdims=True)
        var = ((z - mu) ** 2).mean(-1, keepdims=True)
        return (z - mu) / jnp.sqrt(var + 1e-5) * g + b

    mask4 = (jnp.zeros((B, H, S, S), jnp.float32) if mask is None
             else mask.reshape(B, H, S, S))
    out = src
    attn = None
    for p in layer_params:
        (wq, bq, wk, bk, wv, bv, wo, bo,
         g1, be1, w1, b1, w2, b2, g2, be2) = p
        q = linear(out, wq, bq).reshape(B, S, H, Dh).transpose(0, 2, 1, 3)
        k = linear(out, wk, bk).reshape(B, S, H, Dh).transpose(0, 2, 1, 3)
        v = linear(out, wv, bv).reshape(B, S, H, Dh).transpose(0, 2, 1, 3)
        scores = jnp.einsum('bhqd,bhkd->bhqk', q, k) / math.sqrt(Dh) + mask4
        p_attn = jax.nn.softmax(scores, axis=-1)
        ctx = jnp.einsum('bhqk,bhkd->bhqd', p_attn, v)
        ctx = ctx.transpose(0, 2, 1, 3).reshape(B, S, D)
        attn_out = linear(ctx, wo, bo)
        attn = p_attn.mean(axis=1)
        h1 = ln(out + attn_out, g1, be1)
        f = linear(jax.nn.relu(linear(h1, w1, b1)), w2, b2)
        out = ln(h1 + f, g2, be2)
    if norm_params is not None:
        out = ln(out, norm_params[0], norm_params[1])
    return out, attn


if __name__ == "__main__":
    key = jax.random.PRNGKey(0)
    B, S, D, H, FF, L = 2, 8, 32, 4, 64, 2   # batch, seq, d_model, heads, ffn, layers

    k_x, k_m, k_p, k_n = jax.random.split(key, 4)
    src = jax.random.normal(k_x, (B, S, D), jnp.float32)
    # additive float attention mask in the PyTorch (B*H, S, S) layout
    mask = 0.1 * jax.random.normal(k_m, (B * H, S, S), jnp.float32)

    layer_params = [make_layer_params(jax.random.fold_in(k_p, i), D, FF)
                    for i in range(L)]
    norm_params = (1.0 + 0.1 * jax.random.normal(jax.random.fold_in(k_n, 0), (D,)),
                   0.1 * jax.random.normal(jax.random.fold_in(k_n, 1), (D,)))

    out, attn = my_transformer_encoder(src, mask, layer_params, norm_params,
                                       num_heads=H)
    out = jax.block_until_ready(out)
    attn = jax.block_until_ready(attn)

    ref_out, ref_attn = reference(src, mask, layer_params, norm_params,
                                  num_heads=H)

    assert out.shape == (B, S, D)
    assert attn.shape == (B, S, S)
    assert jnp.allclose(out, ref_out, atol=2e-3, rtol=2e-3)
    assert jnp.allclose(attn, ref_attn, atol=2e-3, rtol=2e-3)

    print("KERNEL_OK")
</pallas_src>

<mosaic_0001>
module attributes {stable_mosaic.version = 11 : i64} {
  func.func @encoder_layer_kernel(%arg0: i32, %arg1: memref<1x8x32xf32, #tpu.memory_space<vmem>>, %arg2: memref<1x4x8x8xf32, #tpu.memory_space<vmem>>, %arg3: memref<32x32xf32, #tpu.memory_space<vmem>>, %arg4: memref<1x32xf32, #tpu.memory_space<vmem>>, %arg5: memref<32x32xf32, #tpu.memory_space<vmem>>, %arg6: memref<1x32xf32, #tpu.memory_space<vmem>>, %arg7: memref<32x32xf32, #tpu.memory_space<vmem>>, %arg8: memref<1x32xf32, #tpu.memory_space<vmem>>, %arg9: memref<32x32xf32, #tpu.memory_space<vmem>>, %arg10: memref<1x32xf32, #tpu.memory_space<vmem>>, %arg11: memref<1x32xf32, #tpu.memory_space<vmem>>, %arg12: memref<1x32xf32, #tpu.memory_space<vmem>>, %arg13: memref<32x64xf32, #tpu.memory_space<vmem>>, %arg14: memref<1x64xf32, #tpu.memory_space<vmem>>, %arg15: memref<64x32xf32, #tpu.memory_space<vmem>>, %arg16: memref<1x32xf32, #tpu.memory_space<vmem>>, %arg17: memref<1x32xf32, #tpu.memory_space<vmem>>, %arg18: memref<1x32xf32, #tpu.memory_space<vmem>>, %arg19: memref<1x8x32xf32, #tpu.memory_space<vmem>>, %arg20: memref<1x8x8xf32, #tpu.memory_space<vmem>>) attributes {dimension_semantics = [#tpu.dimension_semantics<parallel>], iteration_bounds = array<i64: 2>, scalar_prefetch = 0 : i64, scratch_operands = 0 : i64, tpu.core_type = #tpu.core_type<tc>, window_params = [{transform_indices = @transform_0, window_bounds = array<i64: 1, 8, 32>}, {transform_indices = @transform_1, window_bounds = array<i64: 1, 4, 8, 8>}, {pipeline_mode = #tpu.pipeline_mode<synchronous>, transform_indices = @transform_2, window_bounds = array<i64: 32, 32>}, {pipeline_mode = #tpu.pipeline_mode<synchronous>, transform_indices = @transform_3, window_bounds = array<i64: 1, 32>}, {pipeline_mode = #tpu.pipeline_mode<synchronous>, transform_indices = @transform_4, window_bounds = array<i64: 32, 32>}, {pipeline_mode = #tpu.pipeline_mode<synchronous>, transform_indices = @transform_5, window_bounds = array<i64: 1, 32>}, {pipeline_mode = #tpu.pipeline_mode<synchronous>, transform_indices = @transform_6, window_bounds = array<i64: 32, 32>}, {pipeline_mode = #tpu.pipeline_mode<synchronous>, transform_indices = @transform_7, window_bounds = array<i64: 1, 32>}, {pipeline_mode = #tpu.pipeline_mode<synchronous>, transform_indices = @transform_8, window_bounds = array<i64: 32, 32>}, {pipeline_mode = #tpu.pipeline_mode<synchronous>, transform_indices = @transform_9, window_bounds = array<i64: 1, 32>}, {pipeline_mode = #tpu.pipeline_mode<synchronous>, transform_indices = @transform_10, window_bounds = array<i64: 1, 32>}, {pipeline_mode = #tpu.pipeline_mode<synchronous>, transform_indices = @transform_11, window_bounds = array<i64: 1, 32>}, {pipeline_mode = #tpu.pipeline_mode<synchronous>, transform_indices = @transform_12, window_bounds = array<i64: 32, 64>}, {pipeline_mode = #tpu.pipeline_mode<synchronous>, transform_indices = @transform_13, window_bounds = array<i64: 1, 64>}, {pipeline_mode = #tpu.pipeline_mode<synchronous>, transform_indices = @transform_14, window_bounds = array<i64: 64, 32>}, {pipeline_mode = #tpu.pipeline_mode<synchronous>, transform_indices = @transform_15, window_bounds = array<i64: 1, 32>}, {pipeline_mode = #tpu.pipeline_mode<synchronous>, transform_indices = @transform_16, window_bounds = array<i64: 1, 32>}, {pipeline_mode = #tpu.pipeline_mode<synchronous>, transform_indices = @transform_17, window_bounds = array<i64: 1, 32>}, {transform_indices = @transform_18, window_bounds = array<i64: 1, 8, 32>}, {transform_indices = @transform_19, window_bounds = array<i64: 1, 8, 8>}]} {
    %c0 = arith.constant 0 : index
    %c0_0 = arith.constant 0 : index
    %c0_1 = arith.constant 0 : index
    %0 = vector.load %arg1[%c0, %c0_0, %c0_1] : memref<1x8x32xf32, #tpu.memory_space<vmem>>, vector<1x8x32xf32>
    %1 = vector.shape_cast %0 : vector<1x8x32xf32> to vector<8x32xf32>
    %c0_2 = arith.constant 0 : index
    %c0_3 = arith.constant 0 : index
    %c0_4 = arith.constant 0 : index
    %c0_5 = arith.constant 0 : index
    %2 = vector.load %arg2[%c0_2, %c0_3, %c0_4, %c0_5] : memref<1x4x8x8xf32, #tpu.memory_space<vmem>>, vector<1x4x8x8xf32>
    %3 = vector.shape_cast %2 : vector<1x4x8x8xf32> to vector<4x8x8xf32>
    %c0_6 = arith.constant 0 : index
    %c0_7 = arith.constant 0 : index
    %4 = vector.load %arg3[%c0_6, %c0_7] : memref<32x32xf32, #tpu.memory_space<vmem>>, vector<32x32xf32>
    %cst = arith.constant dense<0.000000e+00> : vector<8x32xf32>
    %5 = tpu.matmul %1, %4, %cst {dimension_numbers = #tpu.dot_dimension_numbers<[1], [0], [0], [1], [0, 0, 1, 1], [], []>} : vector<8x32xf32>, vector<32x32xf32>, vector<8x32xf32> -> vector<8x32xf32>
    %c0_8 = arith.constant 0 : index
    %c0_9 = arith.constant 0 : index
    %6 = vector.load %arg4[%c0_8, %c0_9] : memref<1x32xf32, #tpu.memory_space<vmem>>, vector<1x32xf32>
    %7 = vector.broadcast %6 : vector<1x32xf32> to vector<8x32xf32>
    %8 = arith.addf %5, %7 : vector<8x32xf32>
    %c0_10 = arith.constant 0 : index
    %c0_11 = arith.constant 0 : index
    %9 = vector.load %arg5[%c0_10, %c0_11] : memref<32x32xf32, #tpu.memory_space<vmem>>, vector<32x32xf32>
    %cst_12 = arith.constant dense<0.000000e+00> : vector<8x32xf32>
    %10 = tpu.matmul %1, %9, %cst_12 {dimension_numbers = #tpu.dot_dimension_numbers<[1], [0], [0], [1], [0, 0, 1, 1], [], []>} : vector<8x32xf32>, vector<32x32xf32>, vector<8x32xf32> -> vector<8x32xf32>
    %c0_13 = arith.constant 0 : index
    %c0_14 = arith.constant 0 : index
    %11 = vector.load %arg6[%c0_13, %c0_14] : memref<1x32xf32, #tpu.memory_space<vmem>>, vector<1x32xf32>
    %12 = vector.broadcast %11 : vector<1x32xf32> to vector<8x32xf32>
    %13 = arith.addf %10, %12 : vector<8x32xf32>
    %c0_15 = arith.constant 0 : index
    %c0_16 = arith.constant 0 : index
    %14 = vector.load %arg7[%c0_15, %c0_16] : memref<32x32xf32, #tpu.memory_space<vmem>>, vector<32x32xf32>
    %cst_17 = arith.constant dense<0.000000e+00> : vector<8x32xf32>
    %15 = tpu.matmul %1, %14, %cst_17 {dimension_numbers = #tpu.dot_dimension_numbers<[1], [0], [0], [1], [0, 0, 1, 1], [], []>} : vector<8x32xf32>, vector<32x32xf32>, vector<8x32xf32> -> vector<8x32xf32>
    %c0_18 = arith.constant 0 : index
    %c0_19 = arith.constant 0 : index
    %16 = vector.load %arg8[%c0_18, %c0_19] : memref<1x32xf32, #tpu.memory_space<vmem>>, vector<1x32xf32>
    %17 = vector.broadcast %16 : vector<1x32xf32> to vector<8x32xf32>
    %18 = arith.addf %15, %17 : vector<8x32xf32>
    %cst_20 = arith.constant 0.000000e+00 : f32
    %19 = vector.broadcast %cst_20 : f32 to vector<8x8xf32>
    %cst_21 = arith.constant 0.000000e+00 : f32
    %20 = vector.broadcast %cst_21 : f32 to vector<8x32xf32>
    %21 = vector.extract_strided_slice %8 {offsets = [0, 0], sizes = [8, 8], strides = [1, 1]} : vector<8x32xf32> to vector<8x8xf32>
    %cst_22 = arith.constant 0.353553385 : f32
    %22 = vector.broadcast %cst_22 : f32 to vector<8x8xf32>
    %23 = arith.mulf %21, %22 : vector<8x8xf32>
    %24 = vector.extract_strided_slice %13 {offsets = [0, 0], sizes = [8, 8], strides = [1, 1]} : vector<8x32xf32> to vector<8x8xf32>
    %25 = vector.extract_strided_slice %18 {offsets = [0, 0], sizes = [8, 8], strides = [1, 1]} : vector<8x32xf32> to vector<8x8xf32>
    %cst_23 = arith.constant dense<0.000000e+00> : vector<8x8xf32>
    %26 = tpu.matmul %23, %24, %cst_23 {dimension_numbers = #tpu.dot_dimension_numbers<[1], [1], [0], [0], [0, 0, 1, 0], [], []>} : vector<8x8xf32>, vector<8x8xf32>, vector<8x8xf32> -> vector<8x8xf32>
    %27 = vector.extract_strided_slice %3 {offsets = [0, 0, 0], sizes = [1, 8, 8], strides = [1, 1, 1]} : vector<4x8x8xf32> to vector<1x8x8xf32>
    %28 = vector.shape_cast %27 : vector<1x8x8xf32> to vector<8x8xf32>
    %29 = arith.addf %26, %28 : vector<8x8xf32>
    %cst_24 = arith.constant dense<0xFF800000> : vector<8xf32>
    %30 = vector.multi_reduction <maximumf>, %29, %cst_24 [1] : vector<8x8xf32> to vector<8xf32>
    %31 = vector.shape_cast %30 : vector<8xf32> to vector<8x1xf32>
    %32 = vector.broadcast %31 : vector<8x1xf32> to vector<8x8xf32>
    %33 = arith.subf %29, %32 : vector<8x8xf32>
    %34 = math.exp %33 : vector<8x8xf32>
    %cst_25 = arith.constant dense<0.000000e+00> : vector<8xf32>
    %35 = vector.multi_reduction <add>, %34, %cst_25 [1] : vector<8x8xf32> to vector<8xf32>
    %36 = vector.shape_cast %35 : vector<8xf32> to vector<8x1xf32>
    %37 = vector.broadcast %36 : vector<8x1xf32> to vector<8x8xf32>
    %38 = arith.divf %34, %37 : vector<8x8xf32>
    %39 = arith.addf %19, %38 : vector<8x8xf32>
    %cst_26 = arith.constant dense<0.000000e+00> : vector<8x8xf32>
    %40 = tpu.matmul %38, %25, %cst_26 {dimension_numbers = #tpu.dot_dimension_numbers<[1], [0], [0], [1], [0, 0, 1, 1], [], []>} : vector<8x8xf32>, vector<8x8xf32>, vector<8x8xf32> -> vector<8x8xf32>
    %c0_27 = arith.constant 0 : index
    %c0_28 = arith.constant 0 : index
    %41 = vector.load %arg9[%c0_27, %c0_28] : memref<32x32xf32, #tpu.memory_space<vmem>>, vector<8x32xf32>
    %cst_29 = arith.constant dense<0.000000e+00> : vector<8x32xf32>
    %42 = tpu.matmul %40, %41, %cst_29 {dimension_numbers = #tpu.dot_dimension_numbers<[1], [0], [0], [1], [0, 0, 1, 1], [], []>} : vector<8x8xf32>, vector<8x32xf32>, vector<8x32xf32> -> vector<8x32xf32>
    %43 = arith.addf %20, %42 : vector<8x32xf32>
    %44 = vector.extract_strided_slice %8 {offsets = [0, 8], sizes = [8, 8], strides = [1, 1]} : vector<8x32xf32> to vector<8x8xf32>
    %cst_30 = arith.constant 0.353553385 : f32
    %45 = vector.broadcast %cst_30 : f32 to vector<8x8xf32>
    %46 = arith.mulf %44, %45 : vector<8x8xf32>
    %47 = vector.extract_strided_slice %13 {offsets = [0, 8], sizes = [8, 8], strides = [1, 1]} : vector<8x32xf32> to vector<8x8xf32>
    %48 = vector.extract_strided_slice %18 {offsets = [0, 8], sizes = [8, 8], strides = [1, 1]} : vector<8x32xf32> to vector<8x8xf32>
    %cst_31 = arith.constant dense<0.000000e+00> : vector<8x8xf32>
    %49 = tpu.matmul %46, %47, %cst_31 {dimension_numbers = #tpu.dot_dimension_numbers<[1], [1], [0], [0], [0, 0, 1, 0], [], []>} : vector<8x8xf32>, vector<8x8xf32>, vector<8x8xf32> -> vector<8x8xf32>
    %50 = vector.extract_strided_slice %3 {offsets = [1, 0, 0], sizes = [1, 8, 8], strides = [1, 1, 1]} : vector<4x8x8xf32> to vector<1x8x8xf32>
    %51 = vector.shape_cast %50 : vector<1x8x8xf32> to vector<8x8xf32>
    %52 = arith.addf %49, %51 : vector<8x8xf32>
    %cst_32 = arith.constant dense<0xFF800000> : vector<8xf32>
    %53 = vector.multi_reduction <maximumf>, %52, %cst_32 [1] : vector<8x8xf32> to vector<8xf32>
    %54 = vector.shape_cast %53 : vector<8xf32> to vector<8x1xf32>
    %55 = vector.broadcast %54 : vector<8x1xf32> to vector<8x8xf32>
    %56 = arith.subf %52, %55 : vector<8x8xf32>
    %57 = math.exp %56 : vector<8x8xf32>
    %cst_33 = arith.constant dense<0.000000e+00> : vector<8xf32>
    %58 = vector.multi_reduction <add>, %57, %cst_33 [1] : vector<8x8xf32> to vector<8xf32>
    %59 = vector.shape_cast %58 : vector<8xf32> to vector<8x1xf32>
    %60 = vector.broadcast %59 : vector<8x1xf32> to vector<8x8xf32>
    %61 = arith.divf %57, %60 : vector<8x8xf32>
    %62 = arith.addf %39, %61 : vector<8x8xf32>
    %cst_34 = arith.constant dense<0.000000e+00> : vector<8x8xf32>
    %63 = tpu.matmul %61, %48, %cst_34 {dimension_numbers = #tpu.dot_dimension_numbers<[1], [0], [0], [1], [0, 0, 1, 1], [], []>} : vector<8x8xf32>, vector<8x8xf32>, vector<8x8xf32> -> vector<8x8xf32>
    %c8 = arith.constant 8 : index
    %c0_35 = arith.constant 0 : index
    %64 = vector.load %arg9[%c8, %c0_35] : memref<32x32xf32, #tpu.memory_space<vmem>>, vector<8x32xf32>
    %cst_36 = arith.constant dense<0.000000e+00> : vector<8x32xf32>
    %65 = tpu.matmul %63, %64, %cst_36 {dimension_numbers = #tpu.dot_dimension_numbers<[1], [0], [0], [1], [0, 0, 1, 1], [], []>} : vector<8x8xf32>, vector<8x32xf32>, vector<8x32xf32> -> vector<8x32xf32>
    %66 = arith.addf %43, %65 : vector<8x32xf32>
    %67 = vector.extract_strided_slice %8 {offsets = [0, 16], sizes = [8, 8], strides = [1, 1]} : vector<8x32xf32> to vector<8x8xf32>
    %cst_37 = arith.constant 0.353553385 : f32
    %68 = vector.broadcast %cst_37 : f32 to vector<8x8xf32>
    %69 = arith.mulf %67, %68 : vector<8x8xf32>
    %70 = vector.extract_strided_slice %13 {offsets = [0, 16], sizes = [8, 8], strides = [1, 1]} : vector<8x32xf32> to vector<8x8xf32>
    %71 = vector.extract_strided_slice %18 {offsets = [0, 16], sizes = [8, 8], strides = [1, 1]} : vector<8x32xf32> to vector<8x8xf32>
    %cst_38 = arith.constant dense<0.000000e+00> : vector<8x8xf32>
    %72 = tpu.matmul %69, %70, %cst_38 {dimension_numbers = #tpu.dot_dimension_numbers<[1], [1], [0], [0], [0, 0, 1, 0], [], []>} : vector<8x8xf32>, vector<8x8xf32>, vector<8x8xf32> -> vector<8x8xf32>
    %73 = vector.extract_strided_slice %3 {offsets = [2, 0, 0], sizes = [1, 8, 8], strides = [1, 1, 1]} : vector<4x8x8xf32> to vector<1x8x8xf32>
    %74 = vector.shape_cast %73 : vector<1x8x8xf32> to vector<8x8xf32>
    %75 = arith.addf %72, %74 : vector<8x8xf32>
    %cst_39 = arith.constant dense<0xFF800000> : vector<8xf32>
    %76 = vector.multi_reduction <maximumf>, %75, %cst_39 [1] : vector<8x8xf32> to vector<8xf32>
    %77 = vector.shape_cast %76 : vector<8xf32> to vector<8x1xf32>
    %78 = vector.broadcast %77 : vector<8x1xf32> to vector<8x8xf32>
    %79 = arith.subf %75, %78 : vector<8x8xf32>
    %80 = math.exp %79 : vector<8x8xf32>
    %cst_40 = arith.constant dense<0.000000e+00> : vector<8xf32>
    %81 = vector.multi_reduction <add>, %80, %cst_40 [1] : vector<8x8xf32> to vector<8xf32>
    %82 = vector.shape_cast %81 : vector<8xf32> to vector<8x1xf32>
    %83 = vector.broadcast %82 : vector<8x1xf32> to vector<8x8xf32>
    %84 = arith.divf %80, %83 : vector<8x8xf32>
    %85 = arith.addf %62, %84 : vector<8x8xf32>
    %cst_41 = arith.constant dense<0.000000e+00> : vector<8x8xf32>
    %86 = tpu.matmul %84, %71, %cst_41 {dimension_numbers = #tpu.dot_dimension_numbers<[1], [0], [0], [1], [0, 0, 1, 1], [], []>} : vector<8x8xf32>, vector<8x8xf32>, vector<8x8xf32> -> vector<8x8xf32>
    %c16 = arith.constant 16 : index
    %c0_42 = arith.constant 0 : index
    %87 = vector.load %arg9[%c16, %c0_42] : memref<32x32xf32, #tpu.memory_space<vmem>>, vector<8x32xf32>
    %cst_43 = arith.constant dense<0.000000e+00> : vector<8x32xf32>
    %88 = tpu.matmul %86, %87, %cst_43 {dimension_numbers = #tpu.dot_dimension_numbers<[1], [0], [0], [1], [0, 0, 1, 1], [], []>} : vector<8x8xf32>, vector<8x32xf32>, vector<8x32xf32> -> vector<8x32xf32>
    %89 = arith.addf %66, %88 : vector<8x32xf32>
    %90 = vector.extract_strided_slice %8 {offsets = [0, 24], sizes = [8, 8], strides = [1, 1]} : vector<8x32xf32> to vector<8x8xf32>
    %cst_44 = arith.constant 0.353553385 : f32
    %91 = vector.broadcast %cst_44 : f32 to vector<8x8xf32>
    %92 = arith.mulf %90, %91 : vector<8x8xf32>
    %93 = vector.extract_strided_slice %13 {offsets = [0, 24], sizes = [8, 8], strides = [1, 1]} : vector<8x32xf32> to vector<8x8xf32>
    %94 = vector.extract_strided_slice %18 {offsets = [0, 24], sizes = [8, 8], strides = [1, 1]} : vector<8x32xf32> to vector<8x8xf32>
    %cst_45 = arith.constant dense<0.000000e+00> : vector<8x8xf32>
    %95 = tpu.matmul %92, %93, %cst_45 {dimension_numbers = #tpu.dot_dimension_numbers<[1], [1], [0], [0], [0, 0, 1, 0], [], []>} : vector<8x8xf32>, vector<8x8xf32>, vector<8x8xf32> -> vector<8x8xf32>
    %96 = vector.extract_strided_slice %3 {offsets = [3, 0, 0], sizes = [1, 8, 8], strides = [1, 1, 1]} : vector<4x8x8xf32> to vector<1x8x8xf32>
    %97 = vector.shape_cast %96 : vector<1x8x8xf32> to vector<8x8xf32>
    %98 = arith.addf %95, %97 : vector<8x8xf32>
    %cst_46 = arith.constant dense<0xFF800000> : vector<8xf32>
    %99 = vector.multi_reduction <maximumf>, %98, %cst_46 [1] : vector<8x8xf32> to vector<8xf32>
    %100 = vector.shape_cast %99 : vector<8xf32> to vector<8x1xf32>
    %101 = vector.broadcast %100 : vector<8x1xf32> to vector<8x8xf32>
    %102 = arith.subf %98, %101 : vector<8x8xf32>
    %103 = math.exp %102 : vector<8x8xf32>
    %cst_47 = arith.constant dense<0.000000e+00> : vector<8xf32>
    %104 = vector.multi_reduction <add>, %103, %cst_47 [1] : vector<8x8xf32> to vector<8xf32>
    %105 = vector.shape_cast %104 : vector<8xf32> to vector<8x1xf32>
    %106 = vector.broadcast %105 : vector<8x1xf32> to vector<8x8xf32>
    %107 = arith.divf %103, %106 : vector<8x8xf32>
    %108 = arith.addf %85, %107 : vector<8x8xf32>
    %cst_48 = arith.constant dense<0.000000e+00> : vector<8x8xf32>
    %109 = tpu.matmul %107, %94, %cst_48 {dimension_numbers = #tpu.dot_dimension_numbers<[1], [0], [0], [1], [0, 0, 1, 1], [], []>} : vector<8x8xf32>, vector<8x8xf32>, vector<8x8xf32> -> vector<8x8xf32>
    %c24 = arith.constant 24 : index
    %c0_49 = arith.constant 0 : index
    %110 = vector.load %arg9[%c24, %c0_49] : memref<32x32xf32, #tpu.memory_space<vmem>>, vector<8x32xf32>
    %cst_50 = arith.constant dense<0.000000e+00> : vector<8x32xf32>
    %111 = tpu.matmul %109, %110, %cst_50 {dimension_numbers = #tpu.dot_dimension_numbers<[1], [0], [0], [1], [0, 0, 1, 1], [], []>} : vector<8x8xf32>, vector<8x32xf32>, vector<8x32xf32> -> vector<8x32xf32>
    %112 = arith.addf %89, %111 : vector<8x32xf32>
    %cst_51 = arith.constant 2.500000e-01 : f32
    %113 = vector.broadcast %cst_51 : f32 to vector<8x8xf32>
    %114 = arith.mulf %108, %113 : vector<8x8xf32>
    %c0_52 = arith.constant 0 : index
    %c0_53 = arith.constant 0 : index
    %c0_54 = arith.constant 0 : index
    %115 = vector.load %arg20[%c0_52, %c0_53, %c0_54] : memref<1x8x8xf32, #tpu.memory_space<vmem>>, vector<1x8x8xf32>
    %116 = vector.shape_cast %115 : vector<1x8x8xf32> to vector<8x8xf32>
    %117 = vector.shape_cast %114 : vector<8x8xf32> to vector<1x8x8xf32>
    tpu.vector_store %arg20[%c0_52, %c0_53, %c0_54], %117 {strides = array<i32>} : memref<1x8x8xf32, #tpu.memory_space<vmem>>, vector<1x8x8xf32>,
    %c0_55 = arith.constant 0 : index
    %c0_56 = arith.constant 0 : index
    %118 = vector.load %arg10[%c0_55, %c0_56] : memref<1x32xf32, #tpu.memory_space<vmem>>, vector<1x32xf32>
    %119 = vector.broadcast %118 : vector<1x32xf32> to vector<8x32xf32>
    %120 = arith.addf %112, %119 : vector<8x32xf32>
    %121 = arith.addf %1, %120 : vector<8x32xf32>
    %c0_57 = arith.constant 0 : index
    %c0_58 = arith.constant 0 : index
    %122 = vector.load %arg11[%c0_57, %c0_58] : memref<1x32xf32, #tpu.memory_space<vmem>>, vector<1x32xf32>
    %c0_59 = arith.constant 0 : index
    %c0_60 = arith.constant 0 : index
    %123 = vector.load %arg12[%c0_59, %c0_60] : memref<1x32xf32, #tpu.memory_space<vmem>>, vector<1x32xf32>
    %cst_61 = arith.constant dense<0.000000e+00> : vector<8xf32>
    %124 = vector.multi_reduction <add>, %121, %cst_61 [1] : vector<8x32xf32> to vector<8xf32>
    %125 = vector.shape_cast %124 : vector<8xf32> to vector<8x1xf32>
    %cst_62 = arith.constant 3.200000e+01 : f32
    %126 = vector.broadcast %cst_62 : f32 to vector<8x1xf32>
    %127 = arith.divf %125, %126 : vector<8x1xf32>
    %128 = vector.broadcast %127 : vector<8x1xf32> to vector<8x32xf32>
    %129 = arith.subf %121, %128 : vector<8x32xf32>
    %130 = arith.mulf %129, %129 : vector<8x32xf32>
    %cst_63 = arith.constant dense<0.000000e+00> : vector<8xf32>
    %131 = vector.multi_reduction <add>, %130, %cst_63 [1] : vector<8x32xf32> to vector<8xf32>
    %132 = vector.shape_cast %131 : vector<8xf32> to vector<8x1xf32>
    %cst_64 = arith.constant 3.200000e+01 : f32
    %133 = vector.broadcast %cst_64 : f32 to vector<8x1xf32>
    %134 = arith.divf %132, %133 : vector<8x1xf32>
    %cst_65 = arith.constant 9.99999974E-6 : f32
    %135 = vector.broadcast %cst_65 : f32 to vector<8x1xf32>
    %136 = arith.addf %134, %135 : vector<8x1xf32>
    %137 = math.rsqrt %136 : vector<8x1xf32>
    %138 = vector.broadcast %137 : vector<8x1xf32> to vector<8x32xf32>
    %139 = arith.mulf %129, %138 : vector<8x32xf32>
    %140 = vector.broadcast %122 : vector<1x32xf32> to vector<8x32xf32>
    %141 = arith.mulf %139, %140 : vector<8x32xf32>
    %142 = vector.broadcast %123 : vector<1x32xf32> to vector<8x32xf32>
    %143 = arith.addf %141, %142 : vector<8x32xf32>
    %c0_66 = arith.constant 0 : index
    %c0_67 = arith.constant 0 : index
    %144 = vector.load %arg13[%c0_66, %c0_67] : memref<32x64xf32, #tpu.memory_space<vmem>>, vector<32x64xf32>
    %cst_68 = arith.constant dense<0.000000e+00> : vector<8x64xf32>
    %145 = tpu.matmul %143, %144, %cst_68 {dimension_numbers = #tpu.dot_dimension_numbers<[1], [0], [0], [1], [0, 0, 1, 1], [], []>} : vector<8x32xf32>, vector<32x64xf32>, vector<8x64xf32> -> vector<8x64xf32>
    %c0_69 = arith.constant 0 : index
    %c0_70 = arith.constant 0 : index
    %146 = vector.load %arg14[%c0_69, %c0_70] : memref<1x64xf32, #tpu.memory_space<vmem>>, vector<1x64xf32>
    %147 = vector.broadcast %146 : vector<1x64xf32> to vector<8x64xf32>
    %148 = arith.addf %145, %147 : vector<8x64xf32>
    %cst_71 = arith.constant 0.000000e+00 : f32
    %149 = vector.broadcast %cst_71 : f32 to vector<8x64xf32>
    %150 = arith.maximumf %148, %149 : vector<8x64xf32>
    %c0_72 = arith.constant 0 : index
    %c0_73 = arith.constant 0 : index
    %151 = vector.load %arg15[%c0_72, %c0_73] : memref<64x32xf32, #tpu.memory_space<vmem>>, vector<64x32xf32>
    %cst_74 = arith.constant dense<0.000000e+00> : vector<8x32xf32>
    %152 = tpu.matmul %150, %151, %cst_74 {dimension_numbers = #tpu.dot_dimension_numbers<[1], [0], [0], [1], [0, 0, 1, 1], [], []>} : vector<8x64xf32>, vector<64x32xf32>, vector<8x32xf32> -> vector<8x32xf32>
    %c0_75 = arith.constant 0 : index
    %c0_76 = arith.constant 0 : index
    %153 = vector.load %arg16[%c0_75, %c0_76] : memref<1x32xf32, #tpu.memory_space<vmem>>, vector<1x32xf32>
    %154 = vector.broadcast %153 : vector<1x32xf32> to vector<8x32xf32>
    %155 = arith.addf %152, %154 : vector<8x32xf32>
    %156 = arith.addf %143, %155 : vector<8x32xf32>
    %c0_77 = arith.constant 0 : index
    %c0_78 = arith.constant 0 : index
    %157 = vector.load %arg17[%c0_77, %c0_78] : memref<1x32xf32, #tpu.memory_space<vmem>>, vector<1x32xf32>
    %c0_79 = arith.constant 0 : index
    %c0_80 = arith.constant 0 : index
    %158 = vector.load %arg18[%c0_79, %c0_80] : memref<1x32xf32, #tpu.memory_space<vmem>>, vector<1x32xf32>
    %cst_81 = arith.constant dense<0.000000e+00> : vector<8xf32>
    %159 = vector.multi_reduction <add>, %156, %cst_81 [1] : vector<8x32xf32> to vector<8xf32>
    %160 = vector.shape_cast %159 : vector<8xf32> to vector<8x1xf32>
    %cst_82 = arith.constant 3.200000e+01 : f32
    %161 = vector.broadcast %cst_82 : f32 to vector<8x1xf32>
    %162 = arith.divf %160, %161 : vector<8x1xf32>
    %163 = vector.broadcast %162 : vector<8x1xf32> to vector<8x32xf32>
    %164 = arith.subf %156, %163 : vector<8x32xf32>
    %165 = arith.mulf %164, %164 : vector<8x32xf32>
    %cst_83 = arith.constant dense<0.000000e+00> : vector<8xf32>
    %166 = vector.multi_reduction <add>, %165, %cst_83 [1] : vector<8x32xf32> to vector<8xf32>
    %167 = vector.shape_cast %166 : vector<8xf32> to vector<8x1xf32>
    %cst_84 = arith.constant 3.200000e+01 : f32
    %168 = vector.broadcast %cst_84 : f32 to vector<8x1xf32>
    %169 = arith.divf %167, %168 : vector<8x1xf32>
    %cst_85 = arith.constant 9.99999974E-6 : f32
    %170 = vector.broadcast %cst_85 : f32 to vector<8x1xf32>
    %171 = arith.addf %169, %170 : vector<8x1xf32>
    %172 = math.rsqrt %171 : vector<8x1xf32>
    %173 = vector.broadcast %172 : vector<8x1xf32> to vector<8x32xf32>
    %174 = arith.mulf %164, %173 : vector<8x32xf32>
    %175 = vector.broadcast %157 : vector<1x32xf32> to vector<8x32xf32>
    %176 = arith.mulf %174, %175 : vector<8x32xf32>
    %177 = vector.broadcast %158 : vector<1x32xf32> to vector<8x32xf32>
    %178 = arith.addf %176, %177 : vector<8x32xf32>
    %c0_86 = arith.constant 0 : index
    %c0_87 = arith.constant 0 : index
    %c0_88 = arith.constant 0 : index
    %179 = vector.load %arg19[%c0_86, %c0_87, %c0_88] : memref<1x8x32xf32, #tpu.memory_space<vmem>>, vector<1x8x32xf32>
    %180 = vector.shape_cast %179 : vector<1x8x32xf32> to vector<8x32xf32>
    %181 = vector.shape_cast %178 : vector<8x32xf32> to vector<1x8x32xf32>
    tpu.vector_store %arg19[%c0_86, %c0_87, %c0_88], %181 {strides = array<i32>} : memref<1x8x32xf32, #tpu.memory_space<vmem>>, vector<1x8x32xf32>,
    return
  }
  func.func @transform_0(%arg0: i32) -> (i32, i32, i32) {
    %c0_i32 = arith.constant 0 : i32
    %c0_i32_0 = arith.constant 0 : i32
    %c0_i32_1 = arith.constant 0 : i32
    return %arg0, %c0_i32, %c0_i32_0 : i32, i32, i32
  }
  func.func @transform_1(%arg0: i32) -> (i32, i32, i32, i32) {
    %c0_i32 = arith.constant 0 : i32
    %c0_i32_0 = arith.constant 0 : i32
    %c0_i32_1 = arith.constant 0 : i32
    %c0_i32_2 = arith.constant 0 : i32
    return %arg0, %c0_i32, %c0_i32_0, %c0_i32_1 : i32, i32, i32, i32
  }
  func.func @transform_2(%arg0: i32) -> (i32, i32) {
    %c0_i32 = arith.constant 0 : i32
    %c0_i32_0 = arith.constant 0 : i32
    %c0_i32_1 = arith.constant 0 : i32
    return %c0_i32, %c0_i32_0 : i32, i32
  }
  func.func @transform_3(%arg0: i32) -> (i32, i32) {
    %c0_i32 = arith.constant 0 : i32
    %c0_i32_0 = arith.constant 0 : i32
    %c0_i32_1 = arith.constant 0 : i32
    return %c0_i32, %c0_i32_0 : i32, i32
  }
  func.func @transform_4(%arg0: i32) -> (i32, i32) {
    %c0_i32 = arith.constant 0 : i32
    %c0_i32_0 = arith.constant 0 : i32
    %c0_i32_1 = arith.constant 0 : i32
    return %c0_i32, %c0_i32_0 : i32, i32
  }
  func.func @transform_5(%arg0: i32) -> (i32, i32) {
    %c0_i32 = arith.constant 0 : i32
    %c0_i32_0 = arith.constant 0 : i32
    %c0_i32_1 = arith.constant 0 : i32
    return %c0_i32, %c0_i32_0 : i32, i32
  }
  func.func @transform_6(%arg0: i32) -> (i32, i32) {
    %c0_i32 = arith.constant 0 : i32
    %c0_i32_0 = arith.constant 0 : i32
    %c0_i32_1 = arith.constant 0 : i32
    return %c0_i32, %c0_i32_0 : i32, i32
  }
  func.func @transform_7(%arg0: i32) -> (i32, i32) {
    %c0_i32 = arith.constant 0 : i32
    %c0_i32_0 = arith.constant 0 : i32
    %c0_i32_1 = arith.constant 0 : i32
    return %c0_i32, %c0_i32_0 : i32, i32
  }
  func.func @transform_8(%arg0: i32) -> (i32, i32) {
    %c0_i32 = arith.constant 0 : i32
    %c0_i32_0 = arith.constant 0 : i32
    %c0_i32_1 = arith.constant 0 : i32
    return %c0_i32, %c0_i32_0 : i32, i32
  }
  func.func @transform_9(%arg0: i32) -> (i32, i32) {
    %c0_i32 = arith.constant 0 : i32
    %c0_i32_0 = arith.constant 0 : i32
    %c0_i32_1 = arith.constant 0 : i32
    return %c0_i32, %c0_i32_0 : i32, i32
  }
  func.func @transform_10(%arg0: i32) -> (i32, i32) {
    %c0_i32 = arith.constant 0 : i32
    %c0_i32_0 = arith.constant 0 : i32
    %c0_i32_1 = arith.constant 0 : i32
    return %c0_i32, %c0_i32_0 : i32, i32
  }
  func.func @transform_11(%arg0: i32) -> (i32, i32) {
    %c0_i32 = arith.constant 0 : i32
    %c0_i32_0 = arith.constant 0 : i32
    %c0_i32_1 = arith.constant 0 : i32
    return %c0_i32, %c0_i32_0 : i32, i32
  }
  func.func @transform_12(%arg0: i32) -> (i32, i32) {
    %c0_i32 = arith.constant 0 : i32
    %c0_i32_0 = arith.constant 0 : i32
    %c0_i32_1 = arith.constant 0 : i32
    return %c0_i32, %c0_i32_0 : i32, i32
  }
  func.func @transform_13(%arg0: i32) -> (i32, i32) {
    %c0_i32 = arith.constant 0 : i32
    %c0_i32_0 = arith.constant 0 : i32
    %c0_i32_1 = arith.constant 0 : i32
    return %c0_i32, %c0_i32_0 : i32, i32
  }
  func.func @transform_14(%arg0: i32) -> (i32, i32) {
    %c0_i32 = arith.constant 0 : i32
    %c0_i32_0 = arith.constant 0 : i32
    %c0_i32_1 = arith.constant 0 : i32
    return %c0_i32, %c0_i32_0 : i32, i32
  }
  func.func @transform_15(%arg0: i32) -> (i32, i32) {
    %c0_i32 = arith.constant 0 : i32
    %c0_i32_0 = arith.constant 0 : i32
    %c0_i32_1 = arith.constant 0 : i32
    return %c0_i32, %c0_i32_0 : i32, i32
  }
  func.func @transform_16(%arg0: i32) -> (i32, i32) {
    %c0_i32 = arith.constant 0 : i32
    %c0_i32_0 = arith.constant 0 : i32
    %c0_i32_1 = arith.constant 0 : i32
    return %c0_i32, %c0_i32_0 : i32, i32
  }
  func.func @transform_17(%arg0: i32) -> (i32, i32) {
    %c0_i32 = arith.constant 0 : i32
    %c0_i32_0 = arith.constant 0 : i32
    %c0_i32_1 = arith.constant 0 : i32
    return %c0_i32, %c0_i32_0 : i32, i32
  }
  func.func @transform_18(%arg0: i32) -> (i32, i32, i32) {
    %c0_i32 = arith.constant 0 : i32
    %c0_i32_0 = arith.constant 0 : i32
    %c0_i32_1 = arith.constant 0 : i32
    return %arg0, %c0_i32, %c0_i32_0 : i32, i32, i32
  }
  func.func @transform_19(%arg0: i32) -> (i32, i32, i32) {
    %c0_i32 = arith.constant 0 : i32
    %c0_i32_0 = arith.constant 0 : i32
    %c0_i32_1 = arith.constant 0 : i32
    return %arg0, %c0_i32, %c0_i32_0 : i32, i32, i32
  }
}

</mosaic_0001>

<llo_original>
// kernel: tpu_custom_call.1
$region0: #{tpu_custom_call.1}
  #allocation0 [shape = 'u32[]', space=smem, size = 0x4, offset = 0x4, fixed_abs, tag = 'smem constant byte address 0x4 - core index']
  #allocation1 [shape = 'u32[72,128]{1,0:T(1,128)}', space=vmem, size = 0x9000, scoped, tag = 'internal scratch']
  %s0 = inlined_call_operand.hbm [shape: f32[2,8,32], index: 0, kind: input, shape index: {}]
  %s1 = inlined_call_operand.vmem [shape: f32[2,4,8,8], index: 1, kind: input, shape index: {}]
  %s2 = inlined_call_operand.vmem [shape: f32[32,32], index: 2, kind: input, shape index: {}]
  %s3 = inlined_call_operand.vmem [shape: f32[1,32], index: 3, kind: input, shape index: {}]
  %s4 = inlined_call_operand.hbm [shape: f32[32,32], index: 4, kind: input, shape index: {}]
  %s5 = inlined_call_operand.vmem [shape: f32[1,32], index: 5, kind: input, shape index: {}]
  %s6 = inlined_call_operand.hbm [shape: f32[32,32], index: 6, kind: input, shape index: {}]
  %s7 = inlined_call_operand.vmem [shape: f32[1,32], index: 7, kind: input, shape index: {}]
  %s8 = inlined_call_operand.hbm [shape: f32[32,32], index: 8, kind: input, shape index: {}]
  %s9 = inlined_call_operand.vmem [shape: f32[1,32], index: 9, kind: input, shape index: {}]
  %s10 = inlined_call_operand.vmem [shape: f32[1,32], index: 10, kind: input, shape index: {}]
  %s11 = inlined_call_operand.vmem [shape: f32[1,32], index: 11, kind: input, shape index: {}]
  %s12 = inlined_call_operand.hbm [shape: f32[32,64], index: 12, kind: input, shape index: {}]
  %s13 = inlined_call_operand.vmem [shape: f32[1,64], index: 13, kind: input, shape index: {}]
  %s14 = inlined_call_operand.vmem [shape: f32[64,32], index: 14, kind: input, shape index: {}]
  %s15 = inlined_call_operand.vmem [shape: f32[1,32], index: 15, kind: input, shape index: {}]
  %s16 = inlined_call_operand.vmem [shape: f32[1,32], index: 16, kind: input, shape index: {}]
  %s17 = inlined_call_operand.vmem [shape: f32[1,32], index: 17, kind: input, shape index: {}]
  %s18 = inlined_call_operand.hbm [shape: f32[2,8,32], index: 18, kind: output, shape index: {0}]
  %s19 = inlined_call_operand.hbm [shape: f32[2,8,8], index: 19, kind: output, shape index: {1}]
  %20 = xla_tuple %s18, %s19
  %s21 = sld [smem:[#allocation0]]
  $region133: #{tpu_custom_call.1} parent=0
    _
  %s23 = ssub.s32 1, %s21
  %s24 = scalar_select 0, %s23, %s21
  $region1: #{tpu_custom_call.1} parent=0
    #allocation2 [shape = 'u8[8192]{0}', space=vmem, size = 0x2000, scoped, tag = 'input window, operand 0']
    #allocation3 [shape = 's32[2]{0}', space=sflag, size = 0x8, scoped, tag = 'scoped memory for tpu_custom_call.1']
    #allocation4 [shape = 's32[2]{0}', space=sflag, size = 0x8, scoped, tag = 'scoped memory for tpu_custom_call.1']
    #allocation5 [shape = 'u8[16384]{0}', space=vmem, size = 0x4000, scoped, tag = 'input window, operand 4, single buffered']
    #allocation6 [shape = 's32[1]{0}', space=sflag, size = 0x4, scoped, tag = 'scoped memory for tpu_custom_call.1']
    #allocation7 [shape = 'u8[16384]{0}', space=vmem, size = 0x4000, scoped, tag = 'input window, operand 6, single buffered']
    #allocation8 [shape = 'u8[16384]{0}', space=vmem, size = 0x4000, scoped, tag = 'input window, operand 8, single buffered']
    #allocation9 [shape = 's32[1]{0}', space=sflag, size = 0x4, scoped, tag = 'scoped memory for tpu_custom_call.1']
    #allocation10 [shape = 'u8[16384]{0}', space=vmem, size = 0x4000, scoped, tag = 'input window, operand 12, single buffered']
    #allocation11 [shape = 'u8[8192]{0}', space=vmem, size = 0x2000, scoped, tag = 'output window, operand 0']
    #allocation12 [shape = 'u8[8192]{0}', space=vmem, size = 0x2000, scoped, tag = 'output window, operand 1']
    #allocation13 [shape = 's32[2]{0}', space=sflag, size = 0x8, scoped, tag = 'scoped memory for tpu_custom_call.1']
    %25 = vsyncpa [#allocation3], 0
    %s26 = scalar_lea.sflag [#allocation3], 1
    %27 = vsyncpa %s26, 0
    %28 = vsyncpa [#allocation6], 0
    %29 = vsyncpa [#allocation9], 0
    %30 = vsyncpa [#allocation4], 0
    %s31 = scalar_lea.sflag [#allocation4], 1
    %32 = vsyncpa %s31, 0
    %33 = vsyncpa [#allocation13], 0
    %s34 = scalar_lea.sflag [#allocation13], 1
    %35 = vsyncpa %s34, 0
    loop: start=0, step=1, limit=4
    $region2: #{tpu_custom_call.1} parent=1 // loop_pre_header
      _
    $region3: #{tpu_custom_call.1} parent=1 // loop_header
      %s37 = sphi 0, %s41
      %p38 = scmp.ge.s32.totalorder %s37, 4
      %s47 = sphi 0, %s49
      %s50 = sphi 0, %s47
      %s51 = sphi 0, %s50
      %s67 = sphi 0, %s51
      %s73 = sphi 0, %s75
      %s76 = sphi 0, %s73
      %s77 = sphi 0, %s76
      %s93 = sphi 0, %s77
      %s97 = sphi 0, %s97
      %s99 = sphi 0, %s97
      %s100 = sphi 0, %s99
      %s114 = sphi 0, %s100
      %s118 = sphi 0, %s118
      %s120 = sphi 0, %s118
      %s121 = sphi 0, %s120
      %s135 = sphi 0, %s121
      %s139 = sphi 0, %s139
      %s141 = sphi 0, %s139
      %s142 = sphi 0, %s141
      %s156 = sphi 0, %s142
      %s160 = sphi 0, %s160
      %s162 = sphi 0, %s160
      %s163 = sphi 0, %s162
      %s177 = sphi 0, %s163
      %s181 = sphi 0, %s181
      %s183 = sphi 0, %s181
      %s184 = sphi 0, %s183
      %s198 = sphi 0, %s184
      %s202 = sphi 0, %s202
      %s204 = sphi 0, %s202
      %s205 = sphi 0, %s204
      %s219 = sphi 0, %s205
      %s223 = sphi 0, %s223
      %s225 = sphi 0, %s223
      %s226 = sphi 0, %s225
      %s240 = sphi 0, %s226
      %s244 = sphi 0, %s244
      %s246 = sphi 0, %s244
      %s247 = sphi 0, %s246
      %s261 = sphi 0, %s247
      %s265 = sphi 0, %s265
      %s267 = sphi 0, %s265
      %s268 = sphi 0, %s267
      %s282 = sphi 0, %s268
      %s286 = sphi 0, %s286
      %s288 = sphi 0, %s286
      %s289 = sphi 0, %s288
      %s303 = sphi 0, %s289
      %s307 = sphi 0, %s307
      %s309 = sphi 0, %s307
      %s310 = sphi 0, %s309
      %s324 = sphi 0, %s310
      %s328 = sphi 0, %s328
      %s330 = sphi 0, %s328
      %s331 = sphi 0, %s330
      %s345 = sphi 0, %s331
      %s349 = sphi 0, %s349
      %s351 = sphi 0, %s349
      %s352 = sphi 0, %s351
      %s366 = sphi 0, %s352
      %s370 = sphi 0, %s370
      %s372 = sphi 0, %s370
      %s373 = sphi 0, %s372
      %s387 = sphi 0, %s373
      %s391 = sphi 0, %s391
      %s393 = sphi 0, %s391
      %s394 = sphi 0, %s393
      %s408 = sphi 0, %s394
      %s412 = sphi 0, %s412
      %s414 = sphi 0, %s412
      %s415 = sphi 0, %s414
      %s429 = sphi 0, %s415
      %s435 = sphi 0, %s437
      %s438 = sphi 0, %s435
      %s439 = sphi 0, %s438
      %s455 = sphi 0, %s439
      %s461 = sphi 0, %s463
      %s464 = sphi 0, %s461
      %s465 = sphi 0, %s464
      %s481 = sphi 0, %s465
    $region4: #{tpu_custom_call.1} parent=1 // loop_header_branch
      %40 = sbr.rel (%p38) target = $region8
    $region5: #{tpu_custom_call.1} parent=1 // loop_body
      %s42 = ssub.s32 %s37, 1
      %s43 = ssub.s32 %s37, 2
      %s44 = sadd.s32 %s37, 1
      %s45 = ssub.s32 %s37, %s44
      %p46 = scmp.eq.s32.totalorder %s45, 0
      %s48 = sadd.s32 %s47, 1
      %s49 = scalar_select %p46, %s47, %s48
      %p52 = pneg %p46
      %p53 = scmp.eq.s32.totalorder %s37, 1
      %p54 = por %p52, %p53
      %p55 = scmp.ne.s32.totalorder %s47, %s50
      %p56 = scmp.eq.s32.totalorder %s37, 0
      %p57 = por %p55, %p56
      %p58 = scmp.ne.s32.totalorder %s47, %s50
      %p59 = scmp.eq.s32.totalorder %s42, 1
      %p60 = por %p58, %p59
      %p61 = scmp.ne.s32.totalorder %s50, %s51
      %p62 = scmp.eq.s32.totalorder %s42, 0
      %p63 = por %p61, %p62
      %p64 = scmp.ne.s32.totalorder %s50, %s51
      %p65 = scmp.eq.s32.totalorder %s43, 1
      %p66 = por %p64, %p65
      %p68 = scmp.ne.s32.totalorder %s51, %s67
      %p69 = scmp.eq.s32.totalorder %s43, 0
      %p70 = por %p68, %p69
      %s71 = ssub.s32 %s37, %s44
      %p72 = scmp.eq.s32.totalorder %s71, 0
      %s74 = sadd.s32 %s73, 1
      %s75 = scalar_select %p72, %s73, %s74
      %p78 = pneg %p72
      %p79 = scmp.eq.s32.totalorder %s37, 1
      %p80 = por %p78, %p79
      %p81 = scmp.ne.s32.totalorder %s73, %s76
      %p82 = scmp.eq.s32.totalorder %s37, 0
      %p83 = por %p81, %p82
      %p84 = scmp.ne.s32.totalorder %s73, %s76
      %p85 = scmp.eq.s32.totalorder %s42, 1
      %p86 = por %p84, %p85
      %p87 = scmp.ne.s32.totalorder %s76, %s77
      %p88 = scmp.eq.s32.totalorder %s42, 0
      %p89 = por %p87, %p88
      %p90 = scmp.ne.s32.totalorder %s76, %s77
      %p91 = scmp.eq.s32.totalorder %s43, 1
      %p92 = por %p90, %p91
      %p94 = scmp.ne.s32.totalorder %s77, %s93
      %p95 = scmp.eq.s32.totalorder %s43, 0
      %p96 = por %p94, %p95
      %s98 = sadd.s32 %s97, 1
      %p101 = scmp.eq.s32.totalorder %s37, 1
      %p102 = scmp.ne.s32.totalorder %s97, %s99
      %p103 = scmp.eq.s32.totalorder %s37, 0
      %p104 = por %p102, %p103
      %p105 = scmp.ne.s32.totalorder %s97, %s99
      %p106 = scmp.eq.s32.totalorder %s42, 1
      %p107 = por %p105, %p106
      %p108 = scmp.ne.s32.totalorder %s99, %s100
      %p109 = scmp.eq.s32.totalorder %s42, 0
      %p110 = por %p108, %p109
      %p111 = scmp.ne.s32.totalorder %s99, %s100
      %p112 = scmp.eq.s32.totalorder %s43, 1
      %p113 = por %p111, %p112
      %p115 = scmp.ne.s32.totalorder %s100, %s114
      %p116 = scmp.eq.s32.totalorder %s43, 0
      %p117 = por %p115, %p116
      %s119 = sadd.s32 %s118, 1
      %p122 = scmp.eq.s32.totalorder %s37, 1
      %p123 = scmp.ne.s32.totalorder %s118, %s120
      %p124 = scmp.eq.s32.totalorder %s37, 0
      %p125 = por %p123, %p124
      %p126 = scmp.ne.s32.totalorder %s118, %s120
      %p127 = scmp.eq.s32.totalorder %s42, 1
      %p128 = por %p126, %p127
      %p129 = scmp.ne.s32.totalorder %s120, %s121
      %p130 = scmp.eq.s32.totalorder %s42, 0
      %p131 = por %p129, %p130
      %p132 = scmp.ne.s32.totalorder %s120, %s121
      %p133 = scmp.eq.s32.totalorder %s43, 1
      %p134 = por %p132, %p133
      %p136 = scmp.ne.s32.totalorder %s121, %s135
      %p137 = scmp.eq.s32.totalorder %s43, 0
      %p138 = por %p136, %p137
      %s140 = sadd.s32 %s139, 1
      %p143 = scmp.eq.s32.totalorder %s37, 1
      %p144 = scmp.ne.s32.totalorder %s139, %s141
      %p145 = scmp.eq.s32.totalorder %s37, 0
      %p146 = por %p144, %p145
      %p147 = scmp.ne.s32.totalorder %s139, %s141
      %p148 = scmp.eq.s32.totalorder %s42, 1
      %p149 = por %p147, %p148
      %p150 = scmp.ne.s32.totalorder %s141, %s142
      %p151 = scmp.eq.s32.totalorder %s42, 0
      %p152 = por %p150, %p151
      %p153 = scmp.ne.s32.totalorder %s141, %s142
      %p154 = scmp.eq.s32.totalorder %s43, 1
      %p155 = por %p153, %p154
      %p157 = scmp.ne.s32.totalorder %s142, %s156
      %p158 = scmp.eq.s32.totalorder %s43, 0
      %p159 = por %p157, %p158
      %s161 = sadd.s32 %s160, 1
      %p164 = scmp.eq.s32.totalorder %s37, 1
      %p165 = scmp.ne.s32.totalorder %s160, %s162
      %p166 = scmp.eq.s32.totalorder %s37, 0
      %p167 = por %p165, %p166
      %p168 = scmp.ne.s32.totalorder %s160, %s162
      %p169 = scmp.eq.s32.totalorder %s42, 1
      %p170 = por %p168, %p169
      %p171 = scmp.ne.s32.totalorder %s162, %s163
      %p172 = scmp.eq.s32.totalorder %s42, 0
      %p173 = por %p171, %p172
      %p174 = scmp.ne.s32.totalorder %s162, %s163
      %p175 = scmp.eq.s32.totalorder %s43, 1
      %p176 = por %p174, %p175
      %p178 = scmp.ne.s32.totalorder %s163, %s177
      %p179 = scmp.eq.s32.totalorder %s43, 0
      %p180 = por %p178, %p179
      %s182 = sadd.s32 %s181, 1
      %p185 = scmp.eq.s32.totalorder %s37, 1
      %p186 = scmp.ne.s32.totalorder %s181, %s183
      %p187 = scmp.eq.s32.totalorder %s37, 0
      %p188 = por %p186, %p187
      %p189 = scmp.ne.s32.totalorder %s181, %s183
      %p190 = scmp.eq.s32.totalorder %s42, 1
      %p191 = por %p189, %p190
      %p192 = scmp.ne.s32.totalorder %s183, %s184
      %p193 = scmp.eq.s32.totalorder %s42, 0
      %p194 = por %p192, %p193
      %p195 = scmp.ne.s32.totalorder %s183, %s184
      %p196 = scmp.eq.s32.totalorder %s43, 1
      %p197 = por %p195, %p196
      %p199 = scmp.ne.s32.totalorder %s184, %s198
      %p200 = scmp.eq.s32.totalorder %s43, 0
      %p201 = por %p199, %p200
      %s203 = sadd.s32 %s202, 1
      %p206 = scmp.eq.s32.totalorder %s37, 1
      %p207 = scmp.ne.s32.totalorder %s202, %s204
      %p208 = scmp.eq.s32.totalorder %s37, 0
      %p209 = por %p207, %p208
      %p210 = scmp.ne.s32.totalorder %s202, %s204
      %p211 = scmp.eq.s32.totalorder %s42, 1
      %p212 = por %p210, %p211
      %p213 = scmp.ne.s32.totalorder %s204, %s205
      %p214 = scmp.eq.s32.totalorder %s42, 0
      %p215 = por %p213, %p214
      %p216 = scmp.ne.s32.totalorder %s204, %s205
      %p217 = scmp.eq.s32.totalorder %s43, 1
      %p218 = por %p216, %p217
      %p220 = scmp.ne.s32.totalorder %s205, %s219
      %p221 = scmp.eq.s32.totalorder %s43, 0
      %p222 = por %p220, %p221
      %s224 = sadd.s32 %s223, 1
      %p227 = scmp.eq.s32.totalorder %s37, 1
      %p228 = scmp.ne.s32.totalorder %s223, %s225
      %p229 = scmp.eq.s32.totalorder %s37, 0
      %p230 = por %p228, %p229
      %p231 = scmp.ne.s32.totalorder %s223, %s225
      %p232 = scmp.eq.s32.totalorder %s42, 1
      %p233 = por %p231, %p232
      %p234 = scmp.ne.s32.totalorder %s225, %s226
      %p235 = scmp.eq.s32.totalorder %s42, 0
      %p236 = por %p234, %p235
      %p237 = scmp.ne.s32.totalorder %s225, %s226
      %p238 = scmp.eq.s32.totalorder %s43, 1
      %p239 = por %p237, %p238
      %p241 = scmp.ne.s32.totalorder %s226, %s240
      %p242 = scmp.eq.s32.totalorder %s43, 0
      %p243 = por %p241, %p242
      %s245 = sadd.s32 %s244, 1
      %p248 = scmp.eq.s32.totalorder %s37, 1
      %p249 = scmp.ne.s32.totalorder %s244, %s246
      %p250 = scmp.eq.s32.totalorder %s37, 0
      %p251 = por %p249, %p250
      %p252 = scmp.ne.s32.totalorder %s244, %s246
      %p253 = scmp.eq.s32.totalorder %s42, 1
      %p254 = por %p252, %p253
      %p255 = scmp.ne.s32.totalorder %s246, %s247
      %p256 = scmp.eq.s32.totalorder %s42, 0
      %p257 = por %p255, %p256
      %p258 = scmp.ne.s32.totalorder %s246, %s247
      %p259 = scmp.eq.s32.totalorder %s43, 1
      %p260 = por %p258, %p259
      %p262 = scmp.ne.s32.totalorder %s247, %s261
      %p263 = scmp.eq.s32.totalorder %s43, 0
      %p264 = por %p262, %p263
      %s266 = sadd.s32 %s265, 1
      %p269 = scmp.eq.s32.totalorder %s37, 1
      %p270 = scmp.ne.s32.totalorder %s265, %s267
      %p271 = scmp.eq.s32.totalorder %s37, 0
      %p272 = por %p270, %p271
      %p273 = scmp.ne.s32.totalorder %s265, %s267
      %p274 = scmp.eq.s32.totalorder %s42, 1
      %p275 = por %p273, %p274
      %p276 = scmp.ne.s32.totalorder %s267, %s268
      %p277 = scmp.eq.s32.totalorder %s42, 0
      %p278 = por %p276, %p277
      %p279 = scmp.ne.s32.totalorder %s267, %s268
      %p280 = scmp.eq.s32.totalorder %s43, 1
      %p281 = por %p279, %p280
      %p283 = scmp.ne.s32.totalorder %s268, %s282
      %p284 = scmp.eq.s32.totalorder %s43, 0
      %p285 = por %p283, %p284
      %s287 = sadd.s32 %s286, 1
      %p290 = scmp.eq.s32.totalorder %s37, 1
      %p291 = scmp.ne.s32.totalorder %s286, %s288
      %p292 = scmp.eq.s32.totalorder %s37, 0
      %p293 = por %p291, %p292
      %p294 = scmp.ne.s32.totalorder %s286, %s288
      %p295 = scmp.eq.s32.totalorder %s42, 1
      %p296 = por %p294, %p295
      %p297 = scmp.ne.s32.totalorder %s288, %s289
      %p298 = scmp.eq.s32.totalorder %s42, 0
      %p299 = por %p297, %p298
      %p300 = scmp.ne.s32.totalorder %s288, %s289
      %p301 = scmp.eq.s32.totalorder %s43, 1
      %p302 = por %p300, %p301
      %p304 = scmp.ne.s32.totalorder %s289, %s303
      %p305 = scmp.eq.s32.totalorder %s43, 0
      %p306 = por %p304, %p305
      %s308 = sadd.s32 %s307, 1
      %p311 = scmp.eq.s32.totalorder %s37, 1
      %p312 = scmp.ne.s32.totalorder %s307, %s309
      %p313 = scmp.eq.s32.totalorder %s37, 0
      %p314 = por %p312, %p313
      %p315 = scmp.ne.s32.totalorder %s307, %s309
      %p316 = scmp.eq.s32.totalorder %s42, 1
      %p317 = por %p315, %p316
      %p318 = scmp.ne.s32.totalorder %s309, %s310
      %p319 = scmp.eq.s32.totalorder %s42, 0
      %p320 = por %p318, %p319
      %p321 = scmp.ne.s32.totalorder %s309, %s310
      %p322 = scmp.eq.s32.totalorder %s43, 1
      %p323 = por %p321, %p322
      %p325 = scmp.ne.s32.totalorder %s310, %s324
      %p326 = scmp.eq.s32.totalorder %s43, 0
      %p327 = por %p325, %p326
      %s329 = sadd.s32 %s328, 1
      %p332 = scmp.eq.s32.totalorder %s37, 1
      %p333 = scmp.ne.s32.totalorder %s328, %s330
      %p334 = scmp.eq.s32.totalorder %s37, 0
      %p335 = por %p333, %p334
      %p336 = scmp.ne.s32.totalorder %s328, %s330
      %p337 = scmp.eq.s32.totalorder %s42, 1
      %p338 = por %p336, %p337
      %p339 = scmp.ne.s32.totalorder %s330, %s331
      %p340 = scmp.eq.s32.totalorder %s42, 0
      %p341 = por %p339, %p340
      %p342 = scmp.ne.s32.totalorder %s330, %s331
      %p343 = scmp.eq.s32.totalorder %s43, 1
      %p344 = por %p342, %p343
      %p346 = scmp.ne.s32.totalorder %s331, %s345
      %p347 = scmp.eq.s32.totalorder %s43, 0
      %p348 = por %p346, %p347
      %s350 = sadd.s32 %s349, 1
      %p353 = scmp.eq.s32.totalorder %s37, 1
      %p354 = scmp.ne.s32.totalorder %s349, %s351
      %p355 = scmp.eq.s32.totalorder %s37, 0
      %p356 = por %p354, %p355
      %p357 = scmp.ne.s32.totalorder %s349, %s351
      %p358 = scmp.eq.s32.totalorder %s42, 1
      %p359 = por %p357, %p358
      %p360 = scmp.ne.s32.totalorder %s351, %s352
      %p361 = scmp.eq.s32.totalorder %s42, 0
      %p362 = por %p360, %p361
      %p363 = scmp.ne.s32.totalorder %s351, %s352
      %p364 = scmp.eq.s32.totalorder %s43, 1
      %p365 = por %p363, %p364
      %p367 = scmp.ne.s32.totalorder %s352, %s366
      %p368 = scmp.eq.s32.totalorder %s43, 0
      %p369 = por %p367, %p368
      %s371 = sadd.s32 %s370, 1
      %p374 = scmp.eq.s32.totalorder %s37, 1
      %p375 = scmp.ne.s32.totalorder %s370, %s372
      %p376 = scmp.eq.s32.totalorder %s37, 0
      %p377 = por %p375, %p376
      %p378 = scmp.ne.s32.totalorder %s370, %s372
      %p379 = scmp.eq.s32.totalorder %s42, 1
      %p380 = por %p378, %p379
      %p381 = scmp.ne.s32.totalorder %s372, %s373
      %p382 = scmp.eq.s32.totalorder %s42, 0
      %p383 = por %p381, %p382
      %p384 = scmp.ne.s32.totalorder %s372, %s373
      %p385 = scmp.eq.s32.totalorder %s43, 1
      %p386 = por %p384, %p385
      %p388 = scmp.ne.s32.totalorder %s373, %s387
      %p389 = scmp.eq.s32.totalorder %s43, 0
      %p390 = por %p388, %p389
      %s392 = sadd.s32 %s391, 1
      %p395 = scmp.eq.s32.totalorder %s37, 1
      %p396 = scmp.ne.s32.totalorder %s391, %s393
      %p397 = scmp.eq.s32.totalorder %s37, 0
      %p398 = por %p396, %p397
      %p399 = scmp.ne.s32.totalorder %s391, %s393
      %p400 = scmp.eq.s32.totalorder %s42, 1
      %p401 = por %p399, %p400
      %p402 = scmp.ne.s32.totalorder %s393, %s394
      %p403 = scmp.eq.s32.totalorder %s42, 0
      %p404 = por %p402, %p403
      %p405 = scmp.ne.s32.totalorder %s393, %s394
      %p406 = scmp.eq.s32.totalorder %s43, 1
      %p407 = por %p405, %p406
      %p409 = scmp.ne.s32.totalorder %s394, %s408
      %p410 = scmp.eq.s32.totalorder %s43, 0
      %p411 = por %p409, %p410
      %s413 = sadd.s32 %s412, 1
      %p416 = scmp.eq.s32.totalorder %s37, 1
      %p417 = scmp.ne.s32.totalorder %s412, %s414
      %p418 = scmp.eq.s32.totalorder %s37, 0
      %p419 = por %p417, %p418
      %p420 = scmp.ne.s32.totalorder %s412, %s414
      %p421 = scmp.eq.s32.totalorder %s42, 1
      %p422 = por %p420, %p421
      %p423 = scmp.ne.s32.totalorder %s414, %s415
      %p424 = scmp.eq.s32.totalorder %s42, 0
      %p425 = por %p423, %p424
      %p426 = scmp.ne.s32.totalorder %s414, %s415
      %p427 = scmp.eq.s32.totalorder %s43, 1
      %p428 = por %p426, %p427
      %p430 = scmp.ne.s32.totalorder %s415, %s429
      %p431 = scmp.eq.s32.totalorder %s43, 0
      %p432 = por %p430, %p431
      %s433 = ssub.s32 %s37, %s44
      %p434 = scmp.eq.s32.totalorder %s433, 0
      %s436 = sadd.s32 %s435, 1
      %s437 = scalar_select %p434, %s435, %s436
      %p440 = pneg %p434
      %p441 = scmp.eq.s32.totalorder %s37, 1
      %p442 = por %p440, %p441
      %p443 = scmp.ne.s32.totalorder %s435, %s438
      %p444 = scmp.eq.s32.totalorder %s37, 0
      %p445 = por %p443, %p444
      %p446 = scmp.ne.s32.totalorder %s435, %s438
      %p447 = scmp.eq.s32.totalorder %s42, 1
      %p448 = por %p446, %p447
      %p449 = scmp.ne.s32.totalorder %s438, %s439
      %p450 = scmp.eq.s32.totalorder %s42, 0
      %p451 = por %p449, %p450
      %p452 = scmp.ne.s32.totalorder %s438, %s439
      %p453 = scmp.eq.s32.totalorder %s43, 1
      %p454 = por %p452, %p453
      %p456 = scmp.ne.s32.totalorder %s439, %s455
      %p457 = scmp.eq.s32.totalorder %s43, 0
      %p458 = por %p456, %p457
      %s459 = ssub.s32 %s37, %s44
      %p460 = scmp.eq.s32.totalorder %s459, 0
      %s462 = sadd.s32 %s461, 1
      %s463 = scalar_select %p460, %s461, %s462
      %p466 = pneg %p460
      %p467 = scmp.eq.s32.totalorder %s37, 1
      %p468 = por %p466, %p467
      %p469 = scmp.ne.s32.totalorder %s461, %s464
      %p470 = scmp.eq.s32.totalorder %s37, 0
      %p471 = por %p469, %p470
      %p472 = scmp.ne.s32.totalorder %s461, %s464
      %p473 = scmp.eq.s32.totalorder %s42, 1
      %p474 = por %p472, %p473
      %p475 = scmp.ne.s32.totalorder %s464, %s465
      %p476 = scmp.eq.s32.totalorder %s42, 0
      %p477 = por %p475, %p476
      %p478 = scmp.ne.s32.totalorder %s464, %s465
      %p479 = scmp.eq.s32.totalorder %s43, 1
      %p480 = por %p478, %p479
      %p482 = scmp.ne.s32.totalorder %s465, %s481
      %p483 = scmp.eq.s32.totalorder %s43, 0
      %p484 = por %p482, %p483
      %p485 = scmp.le.s32.totalorder 1, %s37
      %p486 = scmp.lt.s32.totalorder %s37, 3
      %p487 = pnand %p485, %p486
      %p488 = pneg %p487
      // Predicated region
      $region9: #{tpu_custom_call.1} parent=5 // pred_check
        _
      $region10: #{tpu_custom_call.1} parent=5 // pred_check_branch
        %490 = sbr.rel (%p487) target = $region12
      $region11: #{tpu_custom_call.1} parent=5 // pred_region
        %s491 = ssub.s32 %s37, 1
        // Predicated region
        $region13: #{tpu_custom_call.1} parent=11 // pred_check
          %p492 = pneg %p110
        $region14: #{tpu_custom_call.1} parent=11 // pred_check_branch
          %494 = sbr.rel (%p492) target = $region16
        $region15: #{tpu_custom_call.1} parent=11 // pred_region
          _
        $region16: #{tpu_custom_call.1} parent=11 // pred_fallthru
          _
        // Predicated region
        $region17: #{tpu_custom_call.1} parent=11 // pred_check
          %p495 = pneg %p131
        $region18: #{tpu_custom_call.1} parent=11 // pred_check_branch
          %497 = sbr.rel (%p495) target = $region20
        $region19: #{tpu_custom_call.1} parent=11 // pred_region
          _
        $region20: #{tpu_custom_call.1} parent=11 // pred_fallthru
          _
        // Predicated region
        $region21: #{tpu_custom_call.1} parent=11 // pred_check
          %p498 = pneg %p152
        $region22: #{tpu_custom_call.1} parent=11 // pred_check_branch
          %500 = sbr.rel (%p498) target = $region24
        $region23: #{tpu_custom_call.1} parent=11 // pred_region
          %502 = vsyncadd [#allocation6], 0
          %s503 = sshll.u32 %s4, 4
          %s504 = int_to_ptr.hbm [resolvable:$true] %s503
          %s505 = sshll.u32 [#allocation5], 4
          %s506 = int_to_ptr.vmem [resolvable:$true] %s505
          %511 = dma.hbm_to_vmem [thread:$0]  %s504, 512, %s506, [#allocation6], 128, 128, 8
        $region24: #{tpu_custom_call.1} parent=11 // pred_fallthru
          _
        // Predicated region
        $region25: #{tpu_custom_call.1} parent=11 // pred_check
          %p512 = pneg %p173
        $region26: #{tpu_custom_call.1} parent=11 // pred_check_branch
          %514 = sbr.rel (%p512) target = $region28
        $region27: #{tpu_custom_call.1} parent=11 // pred_region
          _
        $region28: #{tpu_custom_call.1} parent=11 // pred_fallthru
          _
        // Predicated region
        $region29: #{tpu_custom_call.1} parent=11 // pred_check
          %p515 = pneg %p194
        $region30: #{tpu_custom_call.1} parent=11 // pred_check_branch
          %517 = sbr.rel (%p515) target = $region32
        $region31: #{tpu_custom_call.1} parent=11 // pred_region
          %519 = vsyncadd [#allocation6], 0
          %s520 = sshll.u32 %s6, 4
          %s521 = int_to_ptr.hbm [resolvable:$true] %s520
          %s522 = sshll.u32 [#allocation7], 4
          %s523 = int_to_ptr.vmem [resolvable:$true] %s522
          %528 = dma.hbm_to_vmem [thread:$0]  %s521, 512, %s523, [#allocation6], 128, 128, 8
        $region32: #{tpu_custom_call.1} parent=11 // pred_fallthru
          _
        // Predicated region
        $region33: #{tpu_custom_call.1} parent=11 // pred_check
          %p529 = pneg %p215
        $region34: #{tpu_custom_call.1} parent=11 // pred_check_branch
          %531 = sbr.rel (%p529) target = $region36
        $region35: #{tpu_custom_call.1} parent=11 // pred_region
          _
        $region36: #{tpu_custom_call.1} parent=11 // pred_fallthru
          _
        // Predicated region
        $region37: #{tpu_custom_call.1} parent=11 // pred_check
          %p532 = pneg %p236
        $region38: #{tpu_custom_call.1} parent=11 // pred_check_branch
          %534 = sbr.rel (%p532) target = $region40
        $region39: #{tpu_custom_call.1} parent=11 // pred_region
          %536 = vsyncadd [#allocation9], 0
          %s537 = sshll.u32 %s8, 4
          %s538 = int_to_ptr.hbm [resolvable:$true] %s537
          %s539 = sshll.u32 [#allocation8], 4
          %s540 = int_to_ptr.vmem [resolvable:$true] %s539
          %545 = dma.hbm_to_vmem [thread:$0]  %s538, 512, %s540, [#allocation9], 128, 128, 8
        $region40: #{tpu_custom_call.1} parent=11 // pred_fallthru
          _
        // Predicated region
        $region41: #{tpu_custom_call.1} parent=11 // pred_check
          %p546 = pneg %p257
        $region42: #{tpu_custom_call.1} parent=11 // pred_check_branch
          %548 = sbr.rel (%p546) target = $region44
        $region43: #{tpu_custom_call.1} parent=11 // pred_region
          _
        $region44: #{tpu_custom_call.1} parent=11 // pred_fallthru
          _
        // Predicated region
        $region45: #{tpu_custom_call.1} parent=11 // pred_check
          %p549 = pneg %p278
        $region46: #{tpu_custom_call.1} parent=11 // pred_check_branch
          %551 = sbr.rel (%p549) target = $region48
        $region47: #{tpu_custom_call.1} parent=11 // pred_region
          _
        $region48: #{tpu_custom_call.1} parent=11 // pred_fallthru
          _
        // Predicated region
        $region49: #{tpu_custom_call.1} parent=11 // pred_check
          %p552 = pneg %p299
        $region50: #{tpu_custom_call.1} parent=11 // pred_check_branch
          %554 = sbr.rel (%p552) target = $region52
        $region51: #{tpu_custom_call.1} parent=11 // pred_region
          _
        $region52: #{tpu_custom_call.1} parent=11 // pred_fallthru
          _
        // Predicated region
        $region53: #{tpu_custom_call.1} parent=11 // pred_check
          %p555 = pneg %p320
        $region54: #{tpu_custom_call.1} parent=11 // pred_check_branch
          %557 = sbr.rel (%p555) target = $region56
        $region55: #{tpu_custom_call.1} parent=11 // pred_region
          %559 = vsyncadd [#allocation9], 0
          %s560 = sshll.u32 %s12, 4
          %s561 = int_to_ptr.hbm [resolvable:$true] %s560
          %s562 = sshll.u32 [#allocation10], 4
          %s563 = int_to_ptr.vmem [resolvable:$true] %s562
          %568 = dma.hbm_to_vmem [thread:$0]  %s561, 512, %s563, [#allocation9], 128, 128, 8
        $region56: #{tpu_custom_call.1} parent=11 // pred_fallthru
          _
        // Predicated region
        $region57: #{tpu_custom_call.1} parent=11 // pred_check
          %p569 = pneg %p341
        $region58: #{tpu_custom_call.1} parent=11 // pred_check_branch
          %571 = sbr.rel (%p569) target = $region60
        $region59: #{tpu_custom_call.1} parent=11 // pred_region
          _
        $region60: #{tpu_custom_call.1} parent=11 // pred_fallthru
          _
        // Predicated region
        $region61: #{tpu_custom_call.1} parent=11 // pred_check
          %p572 = pneg %p362
        $region62: #{tpu_custom_call.1} parent=11 // pred_check_branch
          %574 = sbr.rel (%p572) target = $region64
        $region63: #{tpu_custom_call.1} parent=11 // pred_region
          _
        $region64: #{tpu_custom_call.1} parent=11 // pred_fallthru
          _
        // Predicated region
        $region65: #{tpu_custom_call.1} parent=11 // pred_check
          %p575 = pneg %p383
        $region66: #{tpu_custom_call.1} parent=11 // pred_check_branch
          %577 = sbr.rel (%p575) target = $region68
        $region67: #{tpu_custom_call.1} parent=11 // pred_region
          _
        $region68: #{tpu_custom_call.1} parent=11 // pred_fallthru
          _
        // Predicated region
        $region69: #{tpu_custom_call.1} parent=11 // pred_check
          %p578 = pneg %p404
        $region70: #{tpu_custom_call.1} parent=11 // pred_check_branch
          %580 = sbr.rel (%p578) target = $region72
        $region71: #{tpu_custom_call.1} parent=11 // pred_region
          _
        $region72: #{tpu_custom_call.1} parent=11 // pred_fallthru
          _
        // Predicated region
        $region73: #{tpu_custom_call.1} parent=11 // pred_check
          %p581 = pneg %p425
        $region74: #{tpu_custom_call.1} parent=11 // pred_check_branch
          %583 = sbr.rel (%p581) target = $region76
        $region75: #{tpu_custom_call.1} parent=11 // pred_region
          _
        $region76: #{tpu_custom_call.1} parent=11 // pred_fallthru
          _
      $region12: #{tpu_custom_call.1} parent=5 // pred_fallthru
        _
      %p584 = scmp.lt.s32.totalorder %s37, 2
      // Predicated region
      $region77: #{tpu_custom_call.1} parent=5 // pred_check
        %p585 = pneg %p584
      $region78: #{tpu_custom_call.1} parent=5 // pred_check_branch
        %587 = sbr.rel (%p585) target = $region80
      $region79: #{tpu_custom_call.1} parent=5 // pred_region
        // Predicated region
        $region81: #{tpu_custom_call.1} parent=79 // pred_check
          %p588 = pneg %p57
        $region82: #{tpu_custom_call.1} parent=79 // pred_check_branch
          %590 = sbr.rel (%p588) target = $region84
        $region83: #{tpu_custom_call.1} parent=79 // pred_region
          %s591 = sand.u32 %s47, 1
          %s592 = scalar_lea.sflag [#allocation3], %s591
          %s593 = sand.u32 %s47, 1
          %s594 = smul.addr %s593, 8
          %s595 = scalar_lea.vmem [#allocation2], %s594
          %597 = vsyncadd %s592, 0
          %s598 = smul.addr %s37, 8
          %s599 = scalar_lea.hbm %s0, %s598
          %s601 = sshll.u32 %s599, 4
          %s602 = int_to_ptr.hbm [resolvable:$true] %s601
          %s603 = sshll.u32 %s595, 4
          %s604 = int_to_ptr.vmem [resolvable:$true] %s603
          %606 = dma.hbm_to_vmem [thread:$0]  %s602, 128, %s604, %s592
        $region84: #{tpu_custom_call.1} parent=79 // pred_fallthru
          _
        // Predicated region
        $region85: #{tpu_custom_call.1} parent=79 // pred_check
          %p607 = pneg %p83
        $region86: #{tpu_custom_call.1} parent=79 // pred_check_branch
          %609 = sbr.rel (%p607) target = $region88
        $region87: #{tpu_custom_call.1} parent=79 // pred_region
          %p610 = scmp.lt.s32.totalorder %s37, 1
          %s611 = scalar_select %p610, %s37, 1
          %s612 = smul.addr %s611, 4
          %s613 = smul.addr %s612, 8
          %s614 = scalar_lea.vmem %s1, %s613
        $region88: #{tpu_custom_call.1} parent=79 // pred_fallthru
          _
      $region80: #{tpu_custom_call.1} parent=5 // pred_fallthru
        _
      %p615 = scmp.le.s32.totalorder 1, %s37
      %p616 = scmp.lt.s32.totalorder %s37, 3
      %p617 = pnand %p615, %p616
      %p618 = pneg %p617
      // Predicated region
      $region89: #{tpu_custom_call.1} parent=5 // pred_check
        _
      $region90: #{tpu_custom_call.1} parent=5 // pred_check_branch
        %620 = sbr.rel (%p617) target = $region92
      $region91: #{tpu_custom_call.1} parent=5 // pred_region
        %s621 = ssub.s32 %s37, 1
        %s622 = sand.u32 %s50, 1
        %s623 = scalar_lea.sflag [#allocation3], %s622
        %s624 = sand.u32 %s50, 1
        %s625 = smul.addr %s624, 8
        %s626 = scalar_lea.vmem [#allocation2], %s625
        // Predicated region
        $region93: #{tpu_custom_call.1} parent=91 // pred_check
          %p627 = pneg %p63
        $region94: #{tpu_custom_call.1} parent=91 // pred_check_branch
          %629 = sbr.rel (%p627) target = $region96
        $region95: #{tpu_custom_call.1} parent=91 // pred_region
          %631 = dma.done %s623, 128
        $region96: #{tpu_custom_call.1} parent=91 // pred_fallthru
          _
        // Predicated region
        $region97: #{tpu_custom_call.1} parent=91 // pred_check
          %p632 = pneg %p152
        $region98: #{tpu_custom_call.1} parent=91 // pred_check_branch
          %634 = sbr.rel (%p632) target = $region100
        $region99: #{tpu_custom_call.1} parent=91 // pred_region
          %636 = dma.done [#allocation6], 512
        $region100: #{tpu_custom_call.1} parent=91 // pred_fallthru
          _
        // Predicated region
        $region101: #{tpu_custom_call.1} parent=91 // pred_check
          %p637 = pneg %p194
        $region102: #{tpu_custom_call.1} parent=91 // pred_check_branch
          %639 = sbr.rel (%p637) target = $region104
        $region103: #{tpu_custom_call.1} parent=91 // pred_region
          %641 = dma.done [#allocation6], 512
        $region104: #{tpu_custom_call.1} parent=91 // pred_fallthru
          _
        // Predicated region
        $region105: #{tpu_custom_call.1} parent=91 // pred_check
          %p642 = pneg %p236
        $region106: #{tpu_custom_call.1} parent=91 // pred_check_branch
          %644 = sbr.rel (%p642) target = $region108
        $region107: #{tpu_custom_call.1} parent=91 // pred_region
          %646 = dma.done [#allocation9], 512
        $region108: #{tpu_custom_call.1} parent=91 // pred_fallthru
          _
        // Predicated region
        $region109: #{tpu_custom_call.1} parent=91 // pred_check
          %p647 = pneg %p320
        $region110: #{tpu_custom_call.1} parent=91 // pred_check_branch
          %649 = sbr.rel (%p647) target = $region112
        $region111: #{tpu_custom_call.1} parent=91 // pred_region
          %651 = dma.done [#allocation9], 512
        $region112: #{tpu_custom_call.1} parent=91 // pred_fallthru
          _
        %s652 = sand.u32 %s50, 1
        %s653 = scalar_lea.sflag [#allocation3], %s652
        %s654 = sand.u32 %s50, 1
        %s655 = smul.addr %s654, 8
        %s656 = scalar_lea.vmem [#allocation2], %s655
        %p657 = pneg %p63
        %p658 = pneg %p60
        %p659 = scmp.lt.s32.totalorder %s42, 1
        %s660 = scalar_select %p659, %s42, 1
        %s661 = smul.addr %s660, 4
        %s662 = smul.addr %s661, 8
        %s663 = scalar_lea.vmem %s1, %s662
        %p664 = pneg %p89
        %p665 = pneg %p86
        %p666 = pneg %p110
        %p667 = pneg %p107
        %p668 = pneg %p131
        %p669 = pneg %p128
        %p670 = pneg %p152
        %p671 = pneg %p149
        %p672 = pneg %p173
        %p673 = pneg %p170
        %p674 = pneg %p194
        %p675 = pneg %p191
        %p676 = pneg %p215
        %p677 = pneg %p212
        %p678 = pneg %p236
        %p679 = pneg %p233
        %p680 = pneg %p257
        %p681 = pneg %p254
        %p682 = pneg %p278
        %p683 = pneg %p275
        %p684 = pneg %p299
        %p685 = pneg %p296
        %p686 = pneg %p320
        %p687 = pneg %p317
        %p688 = pneg %p341
        %p689 = pneg %p338
        %p690 = pneg %p362
        %p691 = pneg %p359
        %p692 = pneg %p383
        %p693 = pneg %p380
        %p694 = pneg %p404
        %p695 = pneg %p401
        %p696 = pneg %p425
        %p697 = pneg %p422
        %p698 = pneg %p451
        %p699 = pneg %p448
        %s700 = sand.u32 %s438, 1
        %s701 = scalar_lea.sflag [#allocation4], %s700
        %s702 = sand.u32 %s438, 1
        %s703 = smul.addr %s702, 8
        %s704 = scalar_lea.vmem [#allocation11], %s703
        %p705 = pneg %p477
        %p706 = pneg %p474
        %s707 = sand.u32 %s464, 1
        %s708 = scalar_lea.sflag [#allocation13], %s707
        %s709 = sand.u32 %s464, 1
        %s710 = smul.addr %s709, 8
        %s711 = scalar_lea.vmem [#allocation12], %s710
        %p712 = scmp.lt.s32.totalorder %s42, 1
        %s713 = scalar_select %p712, %s42, 1
        %s714 = smul.addr %s713, 4
        %s715 = smul.addr %s714, 8
        %s716 = scalar_lea.vmem %s1, %s715
        %v717 = vld [vmem:[%s626] sm:$0xff]
        %v718 = vld [vmem:[%s716] sm:$0xff]
        %v719 = vld [vmem:[%s716 + $0x8] sm:$0xff]
        %v720 = vld [vmem:[%s716 + $0x10] sm:$0xff]
        %v721 = vld [vmem:[%s716 + $0x18] sm:$0xff]
        %v722 = vld [vmem:[%s2] sm:$0xff]
        %v723 = vld [vmem:[%s2 + $0x8] sm:$0xff]
        %v724 = vld [vmem:[%s2 + $0x10] sm:$0xff]
        %v725 = vld [vmem:[%s2 + $0x18] sm:$0xff]
        %v726 = vld [vmem:[%s3] sm:$0x1]
        %v728 = vperm.slane %v726, 0
        %vm730 = vcmask 261120
        %v732 = vsel %vm730, %v717, 0
        %734 = vmatpush.msra.mxu0 0.0
        %735 = vmatpush.msra.mxu0 0.0
        %736 = vmatpush.msra.mxu0 0.0
        %737 = vmatpush.msra.mxu0 0.0
        %738 = vmatpush.msra.mxu0 0.0
        %739 = vmatpush.msra.mxu0 0.0
        %740 = vmatpush.msra.mxu0 0.0
        %741 = vmatpush.msra.mxu0 0.0
        %742 = vmatpush.msra.mxu0 0.0
        %743 = vmatpush.msra.mxu0 0.0
        %744 = vmatpush.msra.mxu0 0.0
        %745 = vmatpush.msra.mxu0 0.0
        %746 = vmatpush.msra.mxu0 %v725
        %747 = vmatpush.msra.mxu0 %v724
        %748 = vmatpush.msra.mxu0 %v723
        %749 = vmatpush.msra.mxu0 %v722
        %750 = vmatmul.f32.gmra.mxu0 %v732
        %v751 = vpop.f32.mrf.mxu0
        %v752 = vadd.f32 %v728, %v751
        %753 = vdwg.mxu0
        %v754 = vld [vmem:[#allocation5] sm:$0xff]
        %v755 = vld [vmem:[#allocation5 + $0x8] sm:$0xff]
        %v756 = vld [vmem:[#allocation5 + $0x10] sm:$0xff]
        %v757 = vld [vmem:[#allocation5 + $0x18] sm:$0xff]
        %v758 = vld [vmem:[%s5] sm:$0x1]
        %v760 = vperm.slane %v758, 0
        %762 = vmatpush.msra.mxu0 0.0
        %763 = vmatpush.msra.mxu0 0.0
        %764 = vmatpush.msra.mxu0 0.0
        %765 = vmatpush.msra.mxu0 0.0
        %766 = vmatpush.msra.mxu0 0.0
        %767 = vmatpush.msra.mxu0 0.0
        %768 = vmatpush.msra.mxu0 0.0
        %769 = vmatpush.msra.mxu0 0.0
        %770 = vmatpush.msra.mxu0 0.0
        %771 = vmatpush.msra.mxu0 0.0
        %772 = vmatpush.msra.mxu0 0.0
        %773 = vmatpush.msra.mxu0 0.0
        %774 = vmatpush.msra.mxu0 %v757
        %775 = vmatpush.msra.mxu0 %v756
        %776 = vmatpush.msra.mxu0 %v755
        %777 = vmatpush.msra.mxu0 %v754
        %778 = vmatmul.f32.gmra.mxu0 %v732
        %v779 = vpop.f32.mrf.mxu0
        %v780 = vadd.f32 %v760, %v779
        %781 = vdwg.mxu0
        %v782 = vld [vmem:[#allocation7] sm:$0xff]
        %v783 = vld [vmem:[#allocation7 + $0x8] sm:$0xff]
        %v784 = vld [vmem:[#allocation7 + $0x10] sm:$0xff]
        %v785 = vld [vmem:[#allocation7 + $0x18] sm:$0xff]
        %v786 = vld [vmem:[%s7] sm:$0x1]
        %v788 = vperm.slane %v786, 0
        %790 = vmatpush.msra.mxu0 0.0
        %791 = vmatpush.msra.mxu0 0.0
        %792 = vmatpush.msra.mxu0 0.0
        %793 = vmatpush.msra.mxu0 0.0
        %794 = vmatpush.msra.mxu0 0.0
        %795 = vmatpush.msra.mxu0 0.0
        %796 = vmatpush.msra.mxu0 0.0
        %797 = vmatpush.msra.mxu0 0.0
        %798 = vmatpush.msra.mxu0 0.0
        %799 = vmatpush.msra.mxu0 0.0
        %800 = vmatpush.msra.mxu0 0.0
        %801 = vmatpush.msra.mxu0 0.0
        %802 = vmatpush.msra.mxu0 %v785
        %803 = vmatpush.msra.mxu0 %v784
        %804 = vmatpush.msra.mxu0 %v783
        %805 = vmatpush.msra.mxu0 %v782
        %806 = vmatmul.f32.gmra.mxu0 %v732
        %v807 = vpop.f32.mrf.mxu0
        %v808 = vadd.f32 %v788, %v807
        %809 = vdwg.mxu0
        %v810 = vmul.f32 %v752, 0.35355338
        %vm811 = vcmask 64512
        %v813 = vsel %vm811, %v810, 0
        %v816 = vsel %vm811, %v780, 0
        %818 = vmatpush.xpose.msra.mxu0 0.0
        %819 = vmatpush.xpose.msra.mxu0 0.0
        %820 = vmatpush.xpose.msra.mxu0 0.0
        %821 = vmatpush.xpose.msra.mxu0 0.0
        %822 = vmatpush.xpose.msra.mxu0 0.0
        %823 = vmatpush.xpose.msra.mxu0 0.0
        %824 = vmatpush.xpose.msra.mxu0 0.0
        %825 = vmatpush.xpose.msra.mxu0 0.0
        %826 = vmatpush.xpose.msra.mxu0 0.0
        %827 = vmatpush.xpose.msra.mxu0 0.0
        %828 = vmatpush.xpose.msra.mxu0 0.0
        %829 = vmatpush.xpose.msra.mxu0 0.0
        %830 = vmatpush.xpose.msra.mxu0 0.0
        %831 = vmatpush.xpose.msra.mxu0 0.0
        %832 = vmatpush.xpose.msra.mxu0 0.0
        %833 = vmatpush.xpose.msra.mxu0 %v816
        %834 = vmatmul.f32.gmra.mxu0 %v813
        %v835 = vpop.f32.mrf.mxu0
        %v836 = vadd.f32 %v718, %v835
        %837 = vdwg.mxu0
        %v838 = vsel %vm811, %v836, -inf
        %839 = vmax.xlane.f32.xlu0 %v838
        %v840 = vpop.xlane.xlu0 %839
        %v841 = vsub.f32 %v836, %v840
        %v842 = vmul.f32 %v841, 1.442695
        %v843 = vpow.pop %v842
        %v844 = vsel %vm811, %v843, 0.0
        %845 = vadd.xlane.f32.xlu0 %v844
        %v846 = vpop.xlane.xlu0 %845
        %v847 = vrcp.pop %v846
        %v848 = vmul.f32 %v846, %v847
        %v849 = vsub.f32 1.0, %v848
        %v850 = vmul.f32 %v847, %v849
        %v851 = vadd.f32 %v847, %v850
        %vm852 = vweird.f32 %v846
        %vm853 = vweird.f32 %v847
        %vm854 = vmor %vm852, %vm853
        %v855 = vsel %vm854, %v847, %v851
        %v856 = vand.u32 2147483647, %v846
        %vm857 = vcmp.eq.f32.partialorder %v856, 8.507059e+37
        %v858 = vand.u32 %v846, 2147483648
        %v859 = vor.u32 1.1754944e-38, %v858
        %v860 = vsel %vm857, %v859, %v855
        %v861 = vmul.f32 %v843, %v860
        %v862 = vadd.f32 %v861, 0.0
        %v864 = vsel %vm811, %v861, 0
        %866 = vmatpush.msra.mxu0 0.0
        %867 = vmatpush.msra.mxu0 0.0
        %868 = vmatpush.msra.mxu0 0.0
        %869 = vmatpush.msra.mxu0 0.0
        %870 = vmatpush.msra.mxu0 0.0
        %871 = vmatpush.msra.mxu0 0.0
        %872 = vmatpush.msra.mxu0 0.0
        %873 = vmatpush.msra.mxu0 0.0
        %874 = vmatpush.msra.mxu0 0.0
        %875 = vmatpush.msra.mxu0 0.0
        %876 = vmatpush.msra.mxu0 0.0
        %877 = vmatpush.msra.mxu0 0.0
        %878 = vmatpush.msra.mxu0 0.0
        %879 = vmatpush.msra.mxu0 0.0
        %880 = vmatpush.msra.mxu0 0.0
        %881 = vmatpush.msra.mxu0 %v808
        %882 = vmatmul.f32.gmra.mxu0 %v864
        %v883 = vpop.f32.mrf.mxu0
        %v884 = vadd.f32 0.0, %v883
        %885 = vdwg.mxu0
        %v886 = vld [vmem:[#allocation8] sm:$0xff]
        %887 = vrot.lane.b32.xlu0 %v810, 120
        %v888 = vpop.permute.xlu0 %887
        %889 = vrot.lane.b32.xlu0 %v780, 120
        %v890 = vpop.permute.xlu0 %889
        %v891 = vsel %vm811, %v888, 0
        %v893 = vsel %vm811, %v890, 0
        %895 = vmatpush.xpose.msra.mxu0 0.0
        %896 = vmatpush.xpose.msra.mxu0 0.0
        %897 = vmatpush.xpose.msra.mxu0 0.0
        %898 = vmatpush.xpose.msra.mxu0 0.0
        %899 = vmatpush.xpose.msra.mxu0 0.0
        %900 = vmatpush.xpose.msra.mxu0 0.0
        %901 = vmatpush.xpose.msra.mxu0 0.0
        %902 = vmatpush.xpose.msra.mxu0 0.0
        %903 = vmatpush.xpose.msra.mxu0 0.0
        %904 = vmatpush.xpose.msra.mxu0 0.0
        %905 = vmatpush.xpose.msra.mxu0 0.0
        %906 = vmatpush.xpose.msra.mxu0 0.0
        %907 = vmatpush.xpose.msra.mxu0 0.0
        %908 = vmatpush.xpose.msra.mxu0 0.0
        %909 = vmatpush.xpose.msra.mxu0 0.0
        %910 = vmatpush.xpose.msra.mxu0 %v893
        %911 = vmatmul.f32.gmra.mxu0 %v891
        %v912 = vpop.f32.mrf.mxu0
        %v913 = vadd.f32 %v719, %v912
        %914 = vdwg.mxu0
        %v915 = vsel %vm811, %v913, -inf
        %916 = vmax.xlane.f32.xlu0 %v915
        %v917 = vpop.xlane.xlu0 %916
        %v918 = vsub.f32 %v913, %v917
        %v919 = vmul.f32 %v918, 1.442695
        %v920 = vpow.pop %v919
        %v921 = vsel %vm811, %v920, 0.0
        %922 = vadd.xlane.f32.xlu0 %v921
        %v923 = vpop.xlane.xlu0 %922
        %v924 = vrcp.pop %v923
        %v925 = vmul.f32 %v923, %v924
        %v926 = vsub.f32 1.0, %v925
        %v927 = vmul.f32 %v924, %v926
        %v928 = vadd.f32 %v924, %v927
        %vm929 = vweird.f32 %v923
        %vm930 = vweird.f32 %v924
        %vm931 = vmor %vm929, %vm930
        %v932 = vsel %vm931, %v924, %v928
        %v933 = vand.u32 2147483647, %v923
        %vm934 = vcmp.eq.f32.partialorder %v933, 8.507059e+37
        %v935 = vand.u32 %v923, 2147483648
        %v936 = vor.u32 1.1754944e-38, %v935
        %v937 = vsel %vm934, %v936, %v932
        %v938 = vmul.f32 %v920, %v937
        %v939 = vadd.f32 %v862, %v938
        %941 = vrot.lane.b32.xlu0 %v808, 120
        %v942 = vpop.permute.xlu0 %941
        %v945 = vsel %vm811, %v938, 0
        %947 = vmatpush.msra.mxu0 0.0
        %948 = vmatpush.msra.mxu0 0.0
        %949 = vmatpush.msra.mxu0 0.0
        %950 = vmatpush.msra.mxu0 0.0
        %951 = vmatpush.msra.mxu0 0.0
        %952 = vmatpush.msra.mxu0 0.0
        %953 = vmatpush.msra.mxu0 0.0
        %954 = vmatpush.msra.mxu0 0.0
        %955 = vmatpush.msra.mxu0 0.0
        %956 = vmatpush.msra.mxu0 0.0
        %957 = vmatpush.msra.mxu0 0.0
        %958 = vmatpush.msra.mxu0 0.0
        %959 = vmatpush.msra.mxu0 0.0
        %960 = vmatpush.msra.mxu0 0.0
        %961 = vmatpush.msra.mxu0 0.0
        %962 = vmatpush.msra.mxu0 %v942
        %963 = vmatmul.f32.gmra.mxu0 %v945
        %v964 = vpop.f32.mrf.mxu0
        %v965 = vadd.f32 0.0, %v964
        %966 = vdwg.mxu0
        %v967 = vld [vmem:[#allocation8 + $0x8] sm:$0xff]
        %v969 = vsel %vm811, %v965, 0
        %971 = vmatpush.msra.mxu0 0.0
        %972 = vmatpush.msra.mxu0 0.0
        %973 = vmatpush.msra.mxu0 0.0
        %974 = vmatpush.msra.mxu0 0.0
        %975 = vmatpush.msra.mxu0 0.0
        %976 = vmatpush.msra.mxu0 0.0
        %977 = vmatpush.msra.mxu0 0.0
        %978 = vmatpush.msra.mxu0 0.0
        %979 = vmatpush.msra.mxu0 0.0
        %980 = vmatpush.msra.mxu0 0.0
        %981 = vmatpush.msra.mxu0 0.0
        %982 = vmatpush.msra.mxu0 0.0
        %983 = vmatpush.msra.mxu0 0.0
        %984 = vmatpush.msra.mxu0 0.0
        %985 = vmatpush.msra.mxu0 0.0
        %986 = vmatpush.msra.mxu0 %v967
        %987 = vmatmul.f32.gmra.mxu0 %v969
        %v988 = vpop.f32.mrf.mxu0
        %v989 = vadd.f32 0.0, %v988
        %990 = vdwg.mxu0
        %v992 = vsel %vm811, %v884, 0
        %994 = vmatpush.msra.mxu0 0.0
        %995 = vmatpush.msra.mxu0 0.0
        %996 = vmatpush.msra.mxu0 0.0
        %997 = vmatpush.msra.mxu0 0.0
        %998 = vmatpush.msra.mxu0 0.0
        %999 = vmatpush.msra.mxu0 0.0
        %1000 = vmatpush.msra.mxu0 0.0
        %1001 = vmatpush.msra.mxu0 0.0
        %1002 = vmatpush.msra.mxu0 0.0
        %1003 = vmatpush.msra.mxu0 0.0
        %1004 = vmatpush.msra.mxu0 0.0
        %1005 = vmatpush.msra.mxu0 0.0
        %1006 = vmatpush.msra.mxu0 0.0
        %1007 = vmatpush.msra.mxu0 0.0
        %1008 = vmatpush.msra.mxu0 0.0
        %1009 = vmatpush.msra.mxu0 %v886
        %1010 = vmatmul.f32.gmra.mxu0 %v992
        %v1011 = vpop.f32.mrf.mxu0
        %v1012 = vadd.f32 %v989, %v1011
        %1013 = vdwg.mxu0
        %1014 = vrot.lane.b32.xlu0 %v810, 112
        %v1015 = vpop.permute.xlu0 %1014
        %1016 = vrot.lane.b32.xlu0 %v780, 112
        %v1017 = vpop.permute.xlu0 %1016
        %v1018 = vsel %vm811, %v1015, 0
        %v1020 = vsel %vm811, %v1017, 0
        %1022 = vmatpush.xpose.msra.mxu0 0.0
        %1023 = vmatpush.xpose.msra.mxu0 0.0
        %1024 = vmatpush.xpose.msra.mxu0 0.0
        %1025 = vmatpush.xpose.msra.mxu0 0.0
        %1026 = vmatpush.xpose.msra.mxu0 0.0
        %1027 = vmatpush.xpose.msra.mxu0 0.0
        %1028 = vmatpush.xpose.msra.mxu0 0.0
        %1029 = vmatpush.xpose.msra.mxu0 0.0
        %1030 = vmatpush.xpose.msra.mxu0 0.0
        %1031 = vmatpush.xpose.msra.mxu0 0.0
        %1032 = vmatpush.xpose.msra.mxu0 0.0
        %1033 = vmatpush.xpose.msra.mxu0 0.0
        %1034 = vmatpush.xpose.msra.mxu0 0.0
        %1035 = vmatpush.xpose.msra.mxu0 0.0
        %1036 = vmatpush.xpose.msra.mxu0 0.0
        %1037 = vmatpush.xpose.msra.mxu0 %v1020
        %1038 = vmatmul.f32.gmra.mxu0 %v1018
        %v1039 = vpop.f32.mrf.mxu0
        %v1040 = vadd.f32 %v720, %v1039
        %1041 = vdwg.mxu0
        %v1042 = vsel %vm811, %v1040, -inf
        %1043 = vmax.xlane.f32.xlu0 %v1042
        %v1044 = vpop.xlane.xlu0 %1043
        %v1045 = vsub.f32 %v1040, %v1044
        %v1046 = vmul.f32 %v1045, 1.442695
        %v1047 = vpow.pop %v1046
        %v1048 = vsel %vm811, %v1047, 0.0
        %1049 = vadd.xlane.f32.xlu0 %v1048
        %v1050 = vpop.xlane.xlu0 %1049
        %v1051 = vrcp.pop %v1050
        %v1052 = vmul.f32 %v1050, %v1051
        %v1053 = vsub.f32 1.0, %v1052
        %v1054 = vmul.f32 %v1051, %v1053
        %v1055 = vadd.f32 %v1051, %v1054
        %vm1056 = vweird.f32 %v1050
        %vm1057 = vweird.f32 %v1051
        %vm1058 = vmor %vm1056, %vm1057
        %v1059 = vsel %vm1058, %v1051, %v1055
        %v1060 = vand.u32 2147483647, %v1050
        %vm1061 = vcmp.eq.f32.partialorder %v1060, 8.507059e+37
        %v1062 = vand.u32 %v1050, 2147483648
        %v1063 = vor.u32 1.1754944e-38, %v1062
        %v1064 = vsel %vm1061, %v1063, %v1059
        %v1065 = vmul.f32 %v1047, %v1064
        %v1066 = vadd.f32 %v939, %v1065
        %1067 = vrot.lane.b32.xlu0 %v808, 112
        %v1068 = vpop.permute.xlu0 %1067
        %v1071 = vsel %vm811, %v1065, 0
        %1073 = vmatpush.msra.mxu0 0.0
        %1074 = vmatpush.msra.mxu0 0.0
        %1075 = vmatpush.msra.mxu0 0.0
        %1076 = vmatpush.msra.mxu0 0.0
        %1077 = vmatpush.msra.mxu0 0.0
        %1078 = vmatpush.msra.mxu0 0.0
        %1079 = vmatpush.msra.mxu0 0.0
        %1080 = vmatpush.msra.mxu0 0.0
        %1081 = vmatpush.msra.mxu0 0.0
        %1082 = vmatpush.msra.mxu0 0.0
        %1083 = vmatpush.msra.mxu0 0.0
        %1084 = vmatpush.msra.mxu0 0.0
        %1085 = vmatpush.msra.mxu0 0.0
        %1086 = vmatpush.msra.mxu0 0.0
        %1087 = vmatpush.msra.mxu0 0.0
        %1088 = vmatpush.msra.mxu0 %v1068
        %1089 = vmatmul.f32.gmra.mxu0 %v1071
        %v1090 = vpop.f32.mrf.mxu0
        %v1091 = vadd.f32 0.0, %v1090
        %1092 = vdwg.mxu0
        %v1093 = vld [vmem:[#allocation8 + $0x10] sm:$0xff]
        %v1095 = vsel %vm811, %v1091, 0
        %1097 = vmatpush.msra.mxu0 0.0
        %1098 = vmatpush.msra.mxu0 0.0
        %1099 = vmatpush.msra.mxu0 0.0
        %1100 = vmatpush.msra.mxu0 0.0
        %1101 = vmatpush.msra.mxu0 0.0
        %1102 = vmatpush.msra.mxu0 0.0
        %1103 = vmatpush.msra.mxu0 0.0
        %1104 = vmatpush.msra.mxu0 0.0
        %1105 = vmatpush.msra.mxu0 0.0
        %1106 = vmatpush.msra.mxu0 0.0
        %1107 = vmatpush.msra.mxu0 0.0
        %1108 = vmatpush.msra.mxu0 0.0
        %1109 = vmatpush.msra.mxu0 0.0
        %1110 = vmatpush.msra.mxu0 0.0
        %1111 = vmatpush.msra.mxu0 0.0
        %1112 = vmatpush.msra.mxu0 %v1093
        %1113 = vmatmul.f32.gmra.mxu0 %v1095
        %v1114 = vpop.f32.mrf.mxu0
        %v1115 = vadd.f32 0.0, %v1114
        %1116 = vdwg.mxu0
        %v1117 = vadd.f32 %v1012, %v1115
        %1118 = vrot.lane.b32.xlu0 %v810, 104
        %v1119 = vpop.permute.xlu0 %1118
        %1120 = vrot.lane.b32.xlu0 %v780, 104
        %v1121 = vpop.permute.xlu0 %1120
        %v1122 = vsel %vm811, %v1119, 0
        %v1124 = vsel %vm811, %v1121, 0
        %1126 = vmatpush.xpose.msra.mxu0 0.0
        %1127 = vmatpush.xpose.msra.mxu0 0.0
        %1128 = vmatpush.xpose.msra.mxu0 0.0
        %1129 = vmatpush.xpose.msra.mxu0 0.0
        %1130 = vmatpush.xpose.msra.mxu0 0.0
        %1131 = vmatpush.xpose.msra.mxu0 0.0
        %1132 = vmatpush.xpose.msra.mxu0 0.0
        %1133 = vmatpush.xpose.msra.mxu0 0.0
        %1134 = vmatpush.xpose.msra.mxu0 0.0
        %1135 = vmatpush.xpose.msra.mxu0 0.0
        %1136 = vmatpush.xpose.msra.mxu0 0.0
        %1137 = vmatpush.xpose.msra.mxu0 0.0
        %1138 = vmatpush.xpose.msra.mxu0 0.0
        %1139 = vmatpush.xpose.msra.mxu0 0.0
        %1140 = vmatpush.xpose.msra.mxu0 0.0
        %1141 = vmatpush.xpose.msra.mxu0 %v1124
        %1142 = vmatmul.f32.gmra.mxu0 %v1122
        %v1143 = vpop.f32.mrf.mxu0
        %v1144 = vadd.f32 %v721, %v1143
        %1145 = vdwg.mxu0
        %v1146 = vsel %vm811, %v1144, -inf
        %1147 = vmax.xlane.f32.xlu0 %v1146
        %v1148 = vpop.xlane.xlu0 %1147
        %v1149 = vsub.f32 %v1144, %v1148
        %v1150 = vmul.f32 %v1149, 1.442695
        %v1151 = vpow.pop %v1150
        %v1152 = vsel %vm811, %v1151, 0.0
        %1153 = vadd.xlane.f32.xlu0 %v1152
        %v1154 = vpop.xlane.xlu0 %1153
        %v1155 = vrcp.pop %v1154
        %v1156 = vmul.f32 %v1154, %v1155
        %v1157 = vsub.f32 1.0, %v1156
        %v1158 = vmul.f32 %v1155, %v1157
        %v1159 = vadd.f32 %v1155, %v1158
        %vm1160 = vweird.f32 %v1154
        %vm1161 = vweird.f32 %v1155
        %vm1162 = vmor %vm1160, %vm1161
        %v1163 = vsel %vm1162, %v1155, %v1159
        %v1164 = vand.u32 2147483647, %v1154
        %vm1165 = vcmp.eq.f32.partialorder %v1164, 8.507059e+37
        %v1166 = vand.u32 %v1154, 2147483648
        %v1167 = vor.u32 1.1754944e-38, %v1166
        %v1168 = vsel %vm1165, %v1167, %v1163
        %v1169 = vmul.f32 %v1151, %v1168
        %v1170 = vadd.f32 %v1066, %v1169
        %1171 = vrot.lane.b32.xlu0 %v808, 104
        %v1172 = vpop.permute.xlu0 %1171
        %v1175 = vsel %vm811, %v1169, 0
        %1177 = vmatpush.msra.mxu0 0.0
        %1178 = vmatpush.msra.mxu0 0.0
        %1179 = vmatpush.msra.mxu0 0.0
        %1180 = vmatpush.msra.mxu0 0.0
        %1181 = vmatpush.msra.mxu0 0.0
        %1182 = vmatpush.msra.mxu0 0.0
        %1183 = vmatpush.msra.mxu0 0.0
        %1184 = vmatpush.msra.mxu0 0.0
        %1185 = vmatpush.msra.mxu0 0.0
        %1186 = vmatpush.msra.mxu0 0.0
        %1187 = vmatpush.msra.mxu0 0.0
        %1188 = vmatpush.msra.mxu0 0.0
        %1189 = vmatpush.msra.mxu0 0.0
        %1190 = vmatpush.msra.mxu0 0.0
        %1191 = vmatpush.msra.mxu0 0.0
        %1192 = vmatpush.msra.mxu0 %v1172
        %1193 = vmatmul.f32.gmra.mxu0 %v1175
        %v1194 = vpop.f32.mrf.mxu0
        %v1195 = vadd.f32 0.0, %v1194
        %1196 = vdwg.mxu0
        %v1197 = vld [vmem:[#allocation8 + $0x18] sm:$0xff]
        %v1199 = vsel %vm811, %v1195, 0
        %1201 = vmatpush.msra.mxu0 0.0
        %1202 = vmatpush.msra.mxu0 0.0
        %1203 = vmatpush.msra.mxu0 0.0
        %1204 = vmatpush.msra.mxu0 0.0
        %1205 = vmatpush.msra.mxu0 0.0
        %1206 = vmatpush.msra.mxu0 0.0
        %1207 = vmatpush.msra.mxu0 0.0
        %1208 = vmatpush.msra.mxu0 0.0
        %1209 = vmatpush.msra.mxu0 0.0
        %1210 = vmatpush.msra.mxu0 0.0
        %1211 = vmatpush.msra.mxu0 0.0
        %1212 = vmatpush.msra.mxu0 0.0
        %1213 = vmatpush.msra.mxu0 0.0
        %1214 = vmatpush.msra.mxu0 0.0
        %1215 = vmatpush.msra.mxu0 0.0
        %1216 = vmatpush.msra.mxu0 %v1197
        %1217 = vmatmul.f32.gmra.mxu0 %v1199
        %v1218 = vpop.f32.mrf.mxu0
        %v1219 = vadd.f32 0.0, %v1218
        %1220 = vdwg.mxu0
        %v1221 = vadd.f32 %v1117, %v1219
        %v1222 = vmul.f32 %v1170, 0.25
        %1223 = vst.msk [vmem:[%s711] sm:$0xff] %vm811, %v1222
        %v1224 = vld [vmem:[%s9] sm:$0x1]
        %v1226 = vperm.slane %v1224, 0
        %v1228 = vadd.f32 %v1221, %v1226
        %v1229 = vadd.f32 %v717, %v1228
        %v1230 = vld [vmem:[%s10] sm:$0x1]
        %v1231 = vld [vmem:[%s11] sm:$0x1]
        %v1232 = vsel %vm730, %v1229, 0.0
        %1233 = vadd.xlane.f32.xlu0 %v1232
        %v1234 = vpop.xlane.xlu0 %1233
        %v1235 = vrcp.pop 32.0
        %v1236 = vmul.f32 32.0, %v1235
        %v1237 = vsub.f32 1.0, %v1236
        %v1238 = vmul.f32 %v1235, %v1237
        %v1239 = vadd.f32 %v1235, %v1238
        %vm1240 = vweird.f32 %v1235
        %v1241 = vsel %vm1240, %v1235, %v1239
        %v1242 = vmul.f32 %v1234, %v1241
        %v1243 = vsub.f32 %v1229, %v1242
        %v1244 = vmul.f32 %v1243, %v1243
        %v1245 = vsel %vm730, %v1244, 0.0
        %1246 = vadd.xlane.f32.xlu0 %v1245
        %v1247 = vpop.xlane.xlu0 %1246
        %v1248 = vmul.f32 %v1247, %v1241
        %v1249 = vadd.f32 %v1248, 1e-05
        %v1250 = vrsqrt.pop %v1249
        %v1251 = vmul.f32 %v1250, %v1249
        %v1252 = vmul.f32 %v1251, %v1250
        %v1253 = vmul.f32 0.5, %v1252
        %v1254 = vsub.f32 1.5, %v1253
        %v1255 = vmul.f32 %v1250, %v1254
        %vm1256 = vweird.f32 %v1249
        %vm1257 = vweird.f32 %v1250
        %vm1258 = vmor %vm1256, %vm1257
        %v1259 = vsel %vm1258, %v1250, %v1255
        %v1260 = vmul.f32 %v1243, %v1259
        %v1262 = vperm.slane %v1230, 0
        %v1264 = vmul.f32 %v1260, %v1262
        %v1266 = vperm.slane %v1231, 0
        %v1268 = vadd.f32 %v1264, %v1266
        %v1269 = vld [vmem:[#allocation10] sm:$0xff]
        %v1270 = vld [vmem:[#allocation10 + $0x8] sm:$0xff]
        %v1271 = vld [vmem:[#allocation10 + $0x10] sm:$0xff]
        %v1272 = vld [vmem:[#allocation10 + $0x18] sm:$0xff]
        %v1273 = vld [vmem:[%s13] sm:$0x1]
        %v1275 = vperm.slane %v1273, 0
        %v1278 = vsel %vm730, %v1268, 0
        %1280 = vmatpush.msra.mxu0 0.0
        %1281 = vmatpush.msra.mxu0 0.0
        %1282 = vmatpush.msra.mxu0 0.0
        %1283 = vmatpush.msra.mxu0 0.0
        %1284 = vmatpush.msra.mxu0 0.0
        %1285 = vmatpush.msra.mxu0 0.0
        %1286 = vmatpush.msra.mxu0 0.0
        %1287 = vmatpush.msra.mxu0 0.0
        %1288 = vmatpush.msra.mxu0 0.0
        %1289 = vmatpush.msra.mxu0 0.0
        %1290 = vmatpush.msra.mxu0 0.0
        %1291 = vmatpush.msra.mxu0 0.0
        %1292 = vmatpush.msra.mxu0 %v1272
        %1293 = vmatpush.msra.mxu0 %v1271
        %1294 = vmatpush.msra.mxu0 %v1270
        %1295 = vmatpush.msra.mxu0 %v1269
        %1296 = vmatmul.f32.gmra.mxu0 %v1278
        %v1297 = vpop.f32.mrf.mxu0
        %v1298 = vadd.f32 %v1275, %v1297
        %1299 = vdwg.mxu0
        %v1300 = vmax.f32 %v1298, 0.0
        %v1301 = vld [vmem:[%s14] sm:$0xff]
        %v1302 = vld [vmem:[%s14 + $0x8] sm:$0xff]
        %v1303 = vld [vmem:[%s14 + $0x10] sm:$0xff]
        %v1304 = vld [vmem:[%s14 + $0x18] sm:$0xff]
        %v1305 = vld [vmem:[%s14 + $0x20] sm:$0xff]
        %v1306 = vld [vmem:[%s14 + $0x28] sm:$0xff]
        %v1307 = vld [vmem:[%s14 + $0x30] sm:$0xff]
        %v1308 = vld [vmem:[%s14 + $0x38] sm:$0xff]
        %v1309 = vld [vmem:[%s15] sm:$0x1]
        %v1311 = vperm.slane %v1309, 0
        %vm1313 = vcmask 523264
        %v1315 = vsel %vm1313, %v1300, 0
        %1317 = vmatpush.msra.mxu0 0.0
        %1318 = vmatpush.msra.mxu0 0.0
        %1319 = vmatpush.msra.mxu0 0.0
        %1320 = vmatpush.msra.mxu0 0.0
        %1321 = vmatpush.msra.mxu0 0.0
        %1322 = vmatpush.msra.mxu0 0.0
        %1323 = vmatpush.msra.mxu0 0.0
        %1324 = vmatpush.msra.mxu0 0.0
        %1325 = vmatpush.msra.mxu0 %v1308
        %1326 = vmatpush.msra.mxu0 %v1307
        %1327 = vmatpush.msra.mxu0 %v1306
        %1328 = vmatpush.msra.mxu0 %v1305
        %1329 = vmatpush.msra.mxu0 %v1304
        %1330 = vmatpush.msra.mxu0 %v1303
        %1331 = vmatpush.msra.mxu0 %v1302
        %1332 = vmatpush.msra.mxu0 %v1301
        %1333 = vmatmul.f32.gmra.mxu0 %v1315
        %v1334 = vpop.f32.mrf.mxu0
        %v1335 = vadd.f32 %v1311, %v1334
        %1336 = vdwg.mxu0
        %v1337 = vadd.f32 %v1268, %v1335
        %v1338 = vld [vmem:[%s16] sm:$0x1]
        %v1339 = vld [vmem:[%s17] sm:$0x1]
        %v1340 = vsel %vm730, %v1337, 0.0
        %1341 = vadd.xlane.f32.xlu0 %v1340
        %v1342 = vpop.xlane.xlu0 %1341
        %v1343 = vmul.f32 %v1342, %v1241
        %v1344 = vsub.f32 %v1337, %v1343
        %v1345 = vmul.f32 %v1344, %v1344
        %v1346 = vsel %vm730, %v1345, 0.0
        %1347 = vadd.xlane.f32.xlu0 %v1346
        %v1348 = vpop.xlane.xlu0 %1347
        %v1349 = vmul.f32 %v1348, %v1241
        %v1350 = vadd.f32 %v1349, 1e-05
        %v1351 = vrsqrt.pop %v1350
        %v1352 = vmul.f32 %v1351, %v1350
        %v1353 = vmul.f32 %v1352, %v1351
        %v1354 = vmul.f32 0.5, %v1353
        %v1355 = vsub.f32 1.5, %v1354
        %v1356 = vmul.f32 %v1351, %v1355
        %vm1357 = vweird.f32 %v1350
        %vm1358 = vweird.f32 %v1351
        %vm1359 = vmor %vm1357, %vm1358
        %v1360 = vsel %vm1359, %v1351, %v1356
        %v1361 = vmul.f32 %v1344, %v1360
        %v1363 = vperm.slane %v1338, 0
        %v1365 = vmul.f32 %v1361, %v1363
        %v1367 = vperm.slane %v1339, 0
        %v1369 = vadd.f32 %v1365, %v1367
        %1370 = vst.msk [vmem:[%s704] sm:$0xff] %vm730, %v1369
        %s1371 = sand.u32 %s438, 1
        %s1372 = scalar_lea.sflag [#allocation4], %s1371
        %s1373 = sand.u32 %s438, 1
        %s1374 = smul.addr %s1373, 8
        %s1375 = scalar_lea.vmem [#allocation11], %s1374
        %s1376 = sand.u32 %s464, 1
        %s1377 = scalar_lea.sflag [#allocation13], %s1376
        %s1378 = sand.u32 %s464, 1
        %s1379 = smul.addr %s1378, 8
        %s1380 = scalar_lea.vmem [#allocation12], %s1379
        // Predicated region
        $region113: #{tpu_custom_call.1} parent=91 // pred_check
          %p1381 = pneg %p448
        $region114: #{tpu_custom_call.1} parent=91 // pred_check_branch
          %1383 = sbr.rel (%p1381) target = $region116
        $region115: #{tpu_custom_call.1} parent=91 // pred_region
          %1385 = vsyncadd %s1372, 0
          %s1386 = smul.addr %s42, 8
          %s1387 = scalar_lea.hbm %s18, %s1386
          %s1389 = sshll.u32 %s1375, 4
          %s1390 = int_to_ptr.vmem [resolvable:$true] %s1389
          %s1391 = sshll.u32 %s1387, 4
          %s1392 = int_to_ptr.hbm [resolvable:$true] %s1391
          %1394 = dma.vmem_to_hbm [thread:$0]  %s1390, 128, %s1392, %s1372
        $region116: #{tpu_custom_call.1} parent=91 // pred_fallthru
          _
        // Predicated region
        $region117: #{tpu_custom_call.1} parent=91 // pred_check
          %p1395 = pneg %p474
        $region118: #{tpu_custom_call.1} parent=91 // pred_check_branch
          %1397 = sbr.rel (%p1395) target = $region120
        $region119: #{tpu_custom_call.1} parent=91 // pred_region
          %1399 = vsyncadd %s1377, 0
          %s1400 = smul.addr %s42, 8
          %s1401 = scalar_lea.hbm %s19, %s1400
          %s1403 = sshll.u32 %s1380, 4
          %s1404 = int_to_ptr.vmem [resolvable:$true] %s1403
          %s1405 = sshll.u32 %s1401, 4
          %s1406 = int_to_ptr.hbm [resolvable:$true] %s1405
          %1408 = dma.vmem_to_hbm [thread:$0]  %s1404, 128, %s1406, %s1377
        $region120: #{tpu_custom_call.1} parent=91 // pred_fallthru
          _
      $region92: #{tpu_custom_call.1} parent=5 // pred_fallthru
        _
      %p1409 = scmp.le.s32.totalorder 2, %s37
      // Predicated region
      $region121: #{tpu_custom_call.1} parent=5 // pred_check
        %p1410 = pneg %p1409
      $region122: #{tpu_custom_call.1} parent=5 // pred_check_branch
        %1412 = sbr.rel (%p1410) target = $region124
      $region123: #{tpu_custom_call.1} parent=5 // pred_region
        %s1413 = ssub.s32 %s37, 2
        // Predicated region
        $region125: #{tpu_custom_call.1} parent=123 // pred_check
          %p1414 = pneg %p454
        $region126: #{tpu_custom_call.1} parent=123 // pred_check_branch
          %1416 = sbr.rel (%p1414) target = $region128
        $region127: #{tpu_custom_call.1} parent=123 // pred_region
          %s1417 = sand.u32 %s439, 1
          %s1418 = scalar_lea.sflag [#allocation4], %s1417
          %s1419 = sand.u32 %s439, 1
          %s1420 = smul.addr %s1419, 8
          %s1421 = scalar_lea.vmem [#allocation11], %s1420
          %1423 = dma.done %s1418, 128
        $region128: #{tpu_custom_call.1} parent=123 // pred_fallthru
          _
        // Predicated region
        $region129: #{tpu_custom_call.1} parent=123 // pred_check
          %p1424 = pneg %p480
        $region130: #{tpu_custom_call.1} parent=123 // pred_check_branch
          %1426 = sbr.rel (%p1424) target = $region132
        $region131: #{tpu_custom_call.1} parent=123 // pred_region
          %s1427 = sand.u32 %s465, 1
          %s1428 = scalar_lea.sflag [#allocation13], %s1427
          %s1429 = sand.u32 %s465, 1
          %s1430 = smul.addr %s1429, 8
          %s1431 = scalar_lea.vmem [#allocation12], %s1430
          %1433 = dma.done %s1428, 128
        $region132: #{tpu_custom_call.1} parent=123 // pred_fallthru
          _
      $region124: #{tpu_custom_call.1} parent=5 // pred_fallthru
        _
    $region6: #{tpu_custom_call.1} parent=1 // loop_footer
      %s41 = sadd.s32 1, %s37
    $region7: #{tpu_custom_call.1} parent=1 // loop_footer_branch
      %36 = sbr.rel target = $region3
    $region8: #{tpu_custom_call.1} parent=1 // loop_exit
      _
    %1434 = vsyncpa [#allocation3], 1
    %s1435 = scalar_lea.sflag [#allocation3], 1
    %1436 = vsyncpa %s1435, 1
    %1437 = vsyncpa [#allocation6], 1
    %1438 = vsyncpa [#allocation9], 1
    %1439 = vsyncpa [#allocation4], 1
    %s1440 = scalar_lea.sflag [#allocation4], 1
    %1441 = vsyncpa %s1440, 1
    %1442 = vsyncpa [#allocation13], 1
    %s1443 = scalar_lea.sflag [#allocation13], 1
    %1444 = vsyncpa %s1443, 1

</llo_original>
